<compile_context>
chip_gen: v6e
topology: v6e:2x2x1
jax: 0.10.0
libtpu: 0.0.40
codegen_flags: <defaults>
</compile_context>

<pallas_src>
import jax
import jax.numpy as jnp
from jax.experimental import pallas as pl
from jax.experimental.pallas import tpu as pltpu


def fused_encoder_kernel(emb_ref, bias_ref,
                         wq_ref, bq_ref, wkv_ref, bkv_ref,
                         wo_ref, bo_ref,
                         g1_ref, be1_ref,
                         w1_ref, b1_ref, w2_ref, b2_ref,
                         g2_ref, be2_ref,
                         wfc_ref, bfc_ref,
                         out_ref):
    CB, S, H = emb_ref.shape                # chunk of sequences in this step
    OUT = out_ref.shape[-1]                 # lane-dense (>=128) output width

    x_bf = emb_ref[...].reshape(CB * S, H)  # (CB*S, H) bf16, all tokens
    x_cls_bf = emb_ref[:, 0, :]             # (CB, H) bf16, CLS rows (strided select)

    # ---- K/V for every token (one fused bf16 matmul); Q only for CLS ----
    kv = jnp.dot(x_bf, wkv_ref[...],
                 preferred_element_type=jnp.float32) + bkv_ref[...]   # (CB*S, 2H) f32
    k = kv[:, 0 * H:1 * H].astype(jnp.bfloat16).reshape(CB, S, H)     # 128-aligned slices
    v = kv[:, 1 * H:2 * H].astype(jnp.bfloat16).reshape(CB, S, H)

    q_cls = (jnp.dot(x_cls_bf, wq_ref[...],
                     preferred_element_type=jnp.float32) + bq_ref[...])   # (CB, H) f32
    q = q_cls.astype(jnp.bfloat16)[:, None, :]                            # (CB, 1, H)

    # ---- masked self-attention, CLS query only ----
    scale = float(H) ** -0.5
    scores = jnp.einsum('bqd,bkd->bqk', q, k,
                        preferred_element_type=jnp.float32)          # (CB, 1, S) bf16 MXU
    scores = scores * scale + bias_ref[...]                          # additive mask bias
    # (If an attention_mask row were all zeros this degenerates to a uniform
    #  softmax over -1e9-biased scores, matching HF behavior.)
    scores = scores - jnp.max(scores, axis=-1, keepdims=True)
    p = jnp.exp(scores)
    p = p * pl.reciprocal(jnp.sum(p, axis=-1, keepdims=True), approx=True)
    ctx = jnp.einsum('bqk,bkd->bqd', p.astype(jnp.bfloat16), v,
                     preferred_element_type=jnp.float32)             # (CB, 1, H)
    ctx = ctx.reshape(CB, H)

    attn_out = (jnp.dot(ctx.astype(jnp.bfloat16), wo_ref[...],
                        preferred_element_type=jnp.float32) + bo_ref[...])  # (CB, H)

    def layernorm(z, g, b):
        mu = jnp.mean(z, axis=-1, keepdims=True)
        var = jnp.mean(jnp.square(z - mu), axis=-1, keepdims=True)
        return (z - mu) * jax.lax.rsqrt(var + 1e-5) * g + b

    h = layernorm(x_cls_bf.astype(jnp.float32) + attn_out,
                  g1_ref[...], be1_ref[...])                         # (CB, H)

    # ---- feed-forward on the CLS slab only ----
    ff = jnp.dot(h.astype(jnp.bfloat16), w1_ref[...],
                 preferred_element_type=jnp.float32) + b1_ref[...]
    # TODO(synk): PyTorch nn.GELU defaults to the exact erf form; the tanh
    # approximation is used here for guaranteed Mosaic lowering.
    ff = jax.nn.gelu(ff, approximate=True)
    ff = jnp.dot(ff.astype(jnp.bfloat16), w2_ref[...],
                 preferred_element_type=jnp.float32) + b2_ref[...]
    out = layernorm(h + ff, g2_ref[...], be2_ref[...])               # CLS last_hidden_state

    # ---- fc scoring: VPU multiply + lane reduce; lane-dense padded store ----
    score = jnp.sum(out * wfc_ref[...], axis=-1).reshape(1, CB) + bfc_ref[...]  # (1, CB)
    if OUT == CB:
        out_ref[...] = score
    else:
        out_ref[...] = jnp.concatenate(
            [score, jnp.zeros((1, OUT - CB), jnp.float32)], axis=1)


def encode_and_score(input_ids, attention_mask, params):
    """score = fc(base_model(ids, mask).last_hidden_state[:, 0, :]) for all rows."""
    BT, S = input_ids.shape
    H = params["wq"].shape[0]

    # Single grid step for tiny / single-TC work; 2-way batch split only when
    # each chunk has enough matmul rows to amortize the ~600-cycle step cost
    # and actually feed both v7x TensorCores.
    num_chunks = 2 if (BT % 2 == 0 and (BT // 2) * S >= 256) else 1
    CB = BT // num_chunks
    OUT_LANES = max(128, ((CB + 127) // 128) * 128)   # lane-dense score slab

    # Glue (embedding gather + additive mask bias) stays in plain JAX.
    # TODO(synk): at realistic vocab/batch sizes move this gather in-kernel via
    # PrefetchScalarGridSpec + pl.Element row-gather to avoid the extra HBM round trip.
    emb = jnp.take(params["emb"], input_ids, axis=0)                           # (BT,S,H) bf16
    bias = (1.0 - attention_mask.astype(jnp.float32))[:, None, :] * (-1e9)     # (BT,1,S) f32

    weight_names = ["wq", "bq", "wkv", "bkv", "wo", "bo", "g1", "be1",
                    "w1", "b1", "w2", "b2", "g2", "be2", "wfc", "bfc"]
    weights = [params[n] for n in weight_names]

    def const_spec(a):
        nd = a.ndim
        # Constant window across the grid -> single-buffer the weights
        # (halves their VMEM footprint; important under v7x's 64 MiB VMEM
        # at realistic H/F).
        return pl.BlockSpec(a.shape, lambda i, _nd=nd: (0,) * _nd,
                            pipeline_mode=pl.Buffered(1))

    in_specs = [
        pl.BlockSpec((CB, S, H), lambda i: (i, 0, 0)),   # emb chunk
        pl.BlockSpec((CB, 1, S), lambda i: (i, 0, 0)),   # mask bias chunk
    ] + [const_spec(a) for a in weights]

    out = pl.pallas_call(
        fused_encoder_kernel,
        grid=(num_chunks,),
        in_specs=in_specs,
        out_specs=pl.BlockSpec((1, OUT_LANES), lambda i: (i, 0)),
        out_shape=jax.ShapeDtypeStruct((num_chunks, OUT_LANES), jnp.float32),
        compiler_params=pltpu.CompilerParams(
            dimension_semantics=("parallel",),
            vmem_limit_bytes=32 * 1024 * 1024),
    )(emb, bias, *weights)
    return out[:, :CB].reshape(BT)


def margin_ranking_model_forward(input_ids_a, attention_mask_a,
                                 input_ids_b, attention_mask_b, params):
    # Fuse both sequences into one batch -> one pallas_call total.
    ids = jnp.concatenate([input_ids_a, input_ids_b], axis=0)
    mask = jnp.concatenate([attention_mask_a, attention_mask_b], axis=0)
    scores = encode_and_score(ids, mask, params)
    B = input_ids_a.shape[0]
    return scores[:B], scores[B:]


def init_params(key, vocab, H, F):
    """Deterministic synthetic base-model + fc parameters (matmul weights in bf16)."""
    ks = jax.random.split(key, 10)
    s = 0.05
    bf = lambda a: a.astype(jnp.bfloat16)
    wk = s * jax.random.normal(ks[2], (H, H), jnp.float32)
    wv = s * jax.random.normal(ks[3], (H, H), jnp.float32)
    return {
        "emb": bf(s * jax.random.normal(ks[0], (vocab, H), jnp.float32)),
        "wq": bf(s * jax.random.normal(ks[1], (H, H), jnp.float32)),     # CLS-only query proj
        "bq": jnp.zeros((1, H), jnp.float32),
        "wkv": bf(jnp.concatenate([wk, wv], axis=1)),                    # (H, 2H) fused K/V
        "bkv": jnp.zeros((1, 2 * H), jnp.float32),
        "wo": bf(s * jax.random.normal(ks[4], (H, H), jnp.float32)),
        "bo": jnp.zeros((1, H), jnp.float32),
        "g1": jnp.ones((1, H), jnp.float32),
        "be1": jnp.zeros((1, H), jnp.float32),
        "w1": bf(s * jax.random.normal(ks[5], (H, F), jnp.float32)),
        "b1": jnp.zeros((1, F), jnp.float32),
        "w2": bf(s * jax.random.normal(ks[6], (F, H), jnp.float32)),
        "b2": jnp.zeros((1, H), jnp.float32),
        "g2": jnp.ones((1, H), jnp.float32),
        "be2": jnp.zeros((1, H), jnp.float32),
        # fc = nn.Linear(hidden_size, 1); stored as a (1, H) row for a
        # VPU multiply + lane reduce inside the kernel.
        "wfc": s * jax.random.normal(ks[7], (1, H), jnp.float32),
        "bfc": 0.1 * jnp.ones((1, 1), jnp.float32),
    }


if __name__ == "__main__":
    # small shapes; H=128 keeps every vreg lane-dense (native fit for v5e's MXU;
    # on v6e/v7x H=256 would fill the 256-wide contraction dim better).
    B, S, H, F, VOCAB = 2, 8, 128, 256, 64

    key = jax.random.PRNGKey(0)
    kp, ka, kb = jax.random.split(key, 3)
    params = init_params(kp, VOCAB, H, F)

    input_ids_a = jax.random.randint(ka, (B, S), 0, VOCAB, dtype=jnp.int32)
    input_ids_b = jax.random.randint(kb, (B, S), 0, VOCAB, dtype=jnp.int32)
    attention_mask_a = jnp.array([[1, 1, 1, 1, 1, 1, 0, 0],
                                  [1, 1, 1, 1, 1, 1, 1, 1]], dtype=jnp.int32)
    attention_mask_b = jnp.array([[1, 1, 1, 1, 0, 0, 0, 0],
                                  [1, 1, 1, 1, 1, 1, 1, 0]], dtype=jnp.int32)

    fwd = jax.jit(margin_ranking_model_forward)
    score_a, score_b = fwd(input_ids_a, attention_mask_a,
                           input_ids_b, attention_mask_b, params)
    jax.block_until_ready((score_a, score_b))

    assert score_a.shape == (B,) and score_b.shape == (B,)
    assert bool(jnp.all(jnp.isfinite(score_a))) and bool(jnp.all(jnp.isfinite(score_b)))
    print("KERNEL_OK")
</pallas_src>

<mosaic_0001>
module attributes {stable_mosaic.version = 11 : i64} {
  func.func @fused_encoder_kernel(%arg0: i32, %arg1: memref<4x8x128xbf16, #tpu.memory_space<vmem>>, %arg2: memref<4x1x8xf32, #tpu.memory_space<vmem>>, %arg3: memref<128x128xbf16, #tpu.memory_space<vmem>>, %arg4: memref<1x128xf32, #tpu.memory_space<vmem>>, %arg5: memref<128x256xbf16, #tpu.memory_space<vmem>>, %arg6: memref<1x256xf32, #tpu.memory_space<vmem>>, %arg7: memref<128x128xbf16, #tpu.memory_space<vmem>>, %arg8: memref<1x128xf32, #tpu.memory_space<vmem>>, %arg9: memref<1x128xf32, #tpu.memory_space<vmem>>, %arg10: memref<1x128xf32, #tpu.memory_space<vmem>>, %arg11: memref<128x256xbf16, #tpu.memory_space<vmem>>, %arg12: memref<1x256xf32, #tpu.memory_space<vmem>>, %arg13: memref<256x128xbf16, #tpu.memory_space<vmem>>, %arg14: memref<1x128xf32, #tpu.memory_space<vmem>>, %arg15: memref<1x128xf32, #tpu.memory_space<vmem>>, %arg16: memref<1x128xf32, #tpu.memory_space<vmem>>, %arg17: memref<1x128xf32, #tpu.memory_space<vmem>>, %arg18: memref<1x1xf32, #tpu.memory_space<vmem>>, %arg19: memref<1x128xf32, #tpu.memory_space<vmem>>) attributes {dimension_semantics = [#tpu.dimension_semantics<parallel>], iteration_bounds = array<i64: 1>, scalar_prefetch = 0 : i64, scratch_operands = 0 : i64, tpu.core_type = #tpu.core_type<tc>, window_params = [{transform_indices = @transform_0, window_bounds = array<i64: 4, 8, 128>}, {transform_indices = @transform_1, window_bounds = array<i64: 4, 1, 8>}, {pipeline_mode = #tpu.pipeline_mode<synchronous>, transform_indices = @transform_2, window_bounds = array<i64: 128, 128>}, {pipeline_mode = #tpu.pipeline_mode<synchronous>, transform_indices = @transform_3, window_bounds = array<i64: 1, 128>}, {pipeline_mode = #tpu.pipeline_mode<synchronous>, transform_indices = @transform_4, window_bounds = array<i64: 128, 256>}, {pipeline_mode = #tpu.pipeline_mode<synchronous>, transform_indices = @transform_5, window_bounds = array<i64: 1, 256>}, {pipeline_mode = #tpu.pipeline_mode<synchronous>, transform_indices = @transform_6, window_bounds = array<i64: 128, 128>}, {pipeline_mode = #tpu.pipeline_mode<synchronous>, transform_indices = @transform_7, window_bounds = array<i64: 1, 128>}, {pipeline_mode = #tpu.pipeline_mode<synchronous>, transform_indices = @transform_8, window_bounds = array<i64: 1, 128>}, {pipeline_mode = #tpu.pipeline_mode<synchronous>, transform_indices = @transform_9, window_bounds = array<i64: 1, 128>}, {pipeline_mode = #tpu.pipeline_mode<synchronous>, transform_indices = @transform_10, window_bounds = array<i64: 128, 256>}, {pipeline_mode = #tpu.pipeline_mode<synchronous>, transform_indices = @transform_11, window_bounds = array<i64: 1, 256>}, {pipeline_mode = #tpu.pipeline_mode<synchronous>, transform_indices = @transform_12, window_bounds = array<i64: 256, 128>}, {pipeline_mode = #tpu.pipeline_mode<synchronous>, transform_indices = @transform_13, window_bounds = array<i64: 1, 128>}, {pipeline_mode = #tpu.pipeline_mode<synchronous>, transform_indices = @transform_14, window_bounds = array<i64: 1, 128>}, {pipeline_mode = #tpu.pipeline_mode<synchronous>, transform_indices = @transform_15, window_bounds = array<i64: 1, 128>}, {pipeline_mode = #tpu.pipeline_mode<synchronous>, transform_indices = @transform_16, window_bounds = array<i64: 1, 128>}, {pipeline_mode = #tpu.pipeline_mode<synchronous>, transform_indices = @transform_17, window_bounds = array<i64: 1, 1>}, {transform_indices = @transform_18, window_bounds = array<i64: 1, 128>}]} {
    %c0 = arith.constant 0 : index
    %c0_0 = arith.constant 0 : index
    %c0_1 = arith.constant 0 : index
    %0 = vector.load %arg1[%c0, %c0_0, %c0_1] : memref<4x8x128xbf16, #tpu.memory_space<vmem>>, vector<4x8x128xbf16>
    %1 = vector.shape_cast %0 : vector<4x8x128xbf16> to vector<32x128xbf16>
    %c0_2 = arith.constant 0 : index
    %c0_3 = arith.constant 0 : index
    %c0_4 = arith.constant 0 : index
    %2 = vector.load %arg1[%c0_2, %c0_3, %c0_4] : memref<4x8x128xbf16, #tpu.memory_space<vmem>>, vector<4x1x128xbf16>
    %3 = vector.shape_cast %2 : vector<4x1x128xbf16> to vector<4x128xbf16>
    %c0_5 = arith.constant 0 : index
    %c0_6 = arith.constant 0 : index
    %4 = vector.load %arg5[%c0_5, %c0_6] : memref<128x256xbf16, #tpu.memory_space<vmem>>, vector<128x256xbf16>
    %cst = arith.constant dense<0.000000e+00> : vector<32x256xf32>
    %5 = tpu.matmul %1, %4, %cst {dimension_numbers = #tpu.dot_dimension_numbers<[1], [0], [0], [1], [0, 0, 1, 1], [], []>} : vector<32x128xbf16>, vector<128x256xbf16>, vector<32x256xf32> -> vector<32x256xf32>
    %c0_7 = arith.constant 0 : index
    %c0_8 = arith.constant 0 : index
    %6 = vector.load %arg6[%c0_7, %c0_8] : memref<1x256xf32, #tpu.memory_space<vmem>>, vector<1x256xf32>
    %7 = vector.broadcast %6 : vector<1x256xf32> to vector<32x256xf32>
    %8 = arith.addf %5, %7 : vector<32x256xf32>
    %9 = vector.extract_strided_slice %8 {offsets = [0, 0], sizes = [32, 128], strides = [1, 1]} : vector<32x256xf32> to vector<32x128xf32>
    %10 = arith.truncf %9 : vector<32x128xf32> to vector<32x128xbf16>
    %11 = vector.shape_cast %10 : vector<32x128xbf16> to vector<4x8x128xbf16>
    %12 = vector.extract_strided_slice %8 {offsets = [0, 128], sizes = [32, 128], strides = [1, 1]} : vector<32x256xf32> to vector<32x128xf32>
    %13 = arith.truncf %12 : vector<32x128xf32> to vector<32x128xbf16>
    %14 = vector.shape_cast %13 : vector<32x128xbf16> to vector<4x8x128xbf16>
    %c0_9 = arith.constant 0 : index
    %c0_10 = arith.constant 0 : index
    %15 = vector.load %arg3[%c0_9, %c0_10] : memref<128x128xbf16, #tpu.memory_space<vmem>>, vector<128x128xbf16>
    %cst_11 = arith.constant dense<0.000000e+00> : vector<4x128xf32>
    %16 = tpu.matmul %3, %15, %cst_11 {dimension_numbers = #tpu.dot_dimension_numbers<[1], [0], [0], [1], [0, 0, 1, 1], [], []>} : vector<4x128xbf16>, vector<128x128xbf16>, vector<4x128xf32> -> vector<4x128xf32>
    %c0_12 = arith.constant 0 : index
    %c0_13 = arith.constant 0 : index
    %17 = vector.load %arg4[%c0_12, %c0_13] : memref<1x128xf32, #tpu.memory_space<vmem>>, vector<1x128xf32>
    %18 = vector.broadcast %17 : vector<1x128xf32> to vector<4x128xf32>
    %19 = arith.addf %16, %18 : vector<4x128xf32>
    %20 = arith.truncf %19 : vector<4x128xf32> to vector<4x128xbf16>
    %21 = vector.shape_cast %20 : vector<4x128xbf16> to vector<4x1x128xbf16>
    "tpu.trace_start"() <{level = 10 : i32, message = "bqd,bkd->bqk"}> : () -> ()
    %cst_14 = arith.constant dense<0.000000e+00> : vector<4x1x8xf32>
    %22 = tpu.matmul %21, %11, %cst_14 {dimension_numbers = #tpu.dot_dimension_numbers<[2], [2], [1], [1], [0, 0, 0, 1, 1, 1], [0], [0]>} : vector<4x1x128xbf16>, vector<4x8x128xbf16>, vector<4x1x8xf32> -> vector<4x1x8xf32>
    "tpu.trace_stop"() : () -> ()
    %cst_15 = arith.constant 0.0883883461 : f32
    %23 = vector.broadcast %cst_15 : f32 to vector<4x1x8xf32>
    %24 = arith.mulf %22, %23 : vector<4x1x8xf32>
    %c0_16 = arith.constant 0 : index
    %c0_17 = arith.constant 0 : index
    %c0_18 = arith.constant 0 : index
    %25 = vector.load %arg2[%c0_16, %c0_17, %c0_18] : memref<4x1x8xf32, #tpu.memory_space<vmem>>, vector<4x1x8xf32>
    %26 = arith.addf %24, %25 : vector<4x1x8xf32>
    %cst_19 = arith.constant dense<0xFF800000> : vector<4x1xf32>
    %27 = vector.multi_reduction <maximumf>, %26, %cst_19 [2] : vector<4x1x8xf32> to vector<4x1xf32>
    %28 = vector.shape_cast %27 : vector<4x1xf32> to vector<4x1x1xf32>
    %29 = vector.broadcast %28 : vector<4x1x1xf32> to vector<4x1x8xf32>
    %30 = arith.subf %26, %29 : vector<4x1x8xf32>
    %31 = math.exp %30 : vector<4x1x8xf32>
    %cst_20 = arith.constant dense<0.000000e+00> : vector<4x1xf32>
    %32 = vector.multi_reduction <add>, %31, %cst_20 [2] : vector<4x1x8xf32> to vector<4x1xf32>
    %33 = vector.shape_cast %32 : vector<4x1xf32> to vector<4x1x1xf32>
    %34 = tpu.reciprocal %33 {approx = true} : vector<4x1x1xf32> -> vector<4x1x1xf32>
    %35 = vector.broadcast %34 : vector<4x1x1xf32> to vector<4x1x8xf32>
    %36 = arith.mulf %31, %35 : vector<4x1x8xf32>
    %37 = arith.truncf %36 : vector<4x1x8xf32> to vector<4x1x8xbf16>
    "tpu.trace_start"() <{level = 10 : i32, message = "bqk,bkd->bqd"}> : () -> ()
    %cst_21 = arith.constant dense<0.000000e+00> : vector<4x1x128xf32>
    %38 = tpu.matmul %37, %14, %cst_21 {dimension_numbers = #tpu.dot_dimension_numbers<[2], [1], [1], [2], [0, 0, 0, 1, 1, 2], [0], [0]>} : vector<4x1x8xbf16>, vector<4x8x128xbf16>, vector<4x1x128xf32> -> vector<4x1x128xf32>
    "tpu.trace_stop"() : () -> ()
    %39 = vector.shape_cast %38 : vector<4x1x128xf32> to vector<4x128xf32>
    %40 = arith.truncf %39 : vector<4x128xf32> to vector<4x128xbf16>
    %c0_22 = arith.constant 0 : index
    %c0_23 = arith.constant 0 : index
    %41 = vector.load %arg7[%c0_22, %c0_23] : memref<128x128xbf16, #tpu.memory_space<vmem>>, vector<128x128xbf16>
    %cst_24 = arith.constant dense<0.000000e+00> : vector<4x128xf32>
    %42 = tpu.matmul %40, %41, %cst_24 {dimension_numbers = #tpu.dot_dimension_numbers<[1], [0], [0], [1], [0, 0, 1, 1], [], []>} : vector<4x128xbf16>, vector<128x128xbf16>, vector<4x128xf32> -> vector<4x128xf32>
    %c0_25 = arith.constant 0 : index
    %c0_26 = arith.constant 0 : index
    %43 = vector.load %arg8[%c0_25, %c0_26] : memref<1x128xf32, #tpu.memory_space<vmem>>, vector<1x128xf32>
    %44 = vector.broadcast %43 : vector<1x128xf32> to vector<4x128xf32>
    %45 = arith.addf %42, %44 : vector<4x128xf32>
    %46 = arith.extf %3 : vector<4x128xbf16> to vector<4x128xf32>
    %47 = arith.addf %46, %45 : vector<4x128xf32>
    %c0_27 = arith.constant 0 : index
    %c0_28 = arith.constant 0 : index
    %48 = vector.load %arg9[%c0_27, %c0_28] : memref<1x128xf32, #tpu.memory_space<vmem>>, vector<1x128xf32>
    %c0_29 = arith.constant 0 : index
    %c0_30 = arith.constant 0 : index
    %49 = vector.load %arg10[%c0_29, %c0_30] : memref<1x128xf32, #tpu.memory_space<vmem>>, vector<1x128xf32>
    %cst_31 = arith.constant dense<0.000000e+00> : vector<4xf32>
    %50 = vector.multi_reduction <add>, %47, %cst_31 [1] : vector<4x128xf32> to vector<4xf32>
    %51 = vector.shape_cast %50 : vector<4xf32> to vector<4x1xf32>
    %cst_32 = arith.constant 1.280000e+02 : f32
    %52 = vector.broadcast %cst_32 : f32 to vector<4x1xf32>
    %53 = arith.divf %51, %52 : vector<4x1xf32>
    %54 = vector.broadcast %53 : vector<4x1xf32> to vector<4x128xf32>
    %55 = arith.subf %47, %54 : vector<4x128xf32>
    %56 = arith.mulf %55, %55 : vector<4x128xf32>
    %cst_33 = arith.constant dense<0.000000e+00> : vector<4xf32>
    %57 = vector.multi_reduction <add>, %56, %cst_33 [1] : vector<4x128xf32> to vector<4xf32>
    %58 = vector.shape_cast %57 : vector<4xf32> to vector<4x1xf32>
    %cst_34 = arith.constant 1.280000e+02 : f32
    %59 = vector.broadcast %cst_34 : f32 to vector<4x1xf32>
    %60 = arith.divf %58, %59 : vector<4x1xf32>
    %61 = vector.broadcast %53 : vector<4x1xf32> to vector<4x128xf32>
    %62 = arith.subf %47, %61 : vector<4x128xf32>
    %cst_35 = arith.constant 9.99999974E-6 : f32
    %63 = vector.broadcast %cst_35 : f32 to vector<4x1xf32>
    %64 = arith.addf %60, %63 : vector<4x1xf32>
    %65 = math.rsqrt %64 : vector<4x1xf32>
    %66 = vector.broadcast %65 : vector<4x1xf32> to vector<4x128xf32>
    %67 = arith.mulf %62, %66 : vector<4x128xf32>
    %68 = vector.broadcast %48 : vector<1x128xf32> to vector<4x128xf32>
    %69 = arith.mulf %67, %68 : vector<4x128xf32>
    %70 = vector.broadcast %49 : vector<1x128xf32> to vector<4x128xf32>
    %71 = arith.addf %69, %70 : vector<4x128xf32>
    %72 = arith.truncf %71 : vector<4x128xf32> to vector<4x128xbf16>
    %c0_36 = arith.constant 0 : index
    %c0_37 = arith.constant 0 : index
    %73 = vector.load %arg11[%c0_36, %c0_37] : memref<128x256xbf16, #tpu.memory_space<vmem>>, vector<128x256xbf16>
    %cst_38 = arith.constant dense<0.000000e+00> : vector<4x256xf32>
    %74 = tpu.matmul %72, %73, %cst_38 {dimension_numbers = #tpu.dot_dimension_numbers<[1], [0], [0], [1], [0, 0, 1, 1], [], []>} : vector<4x128xbf16>, vector<128x256xbf16>, vector<4x256xf32> -> vector<4x256xf32>
    %c0_39 = arith.constant 0 : index
    %c0_40 = arith.constant 0 : index
    %75 = vector.load %arg12[%c0_39, %c0_40] : memref<1x256xf32, #tpu.memory_space<vmem>>, vector<1x256xf32>
    %76 = vector.broadcast %75 : vector<1x256xf32> to vector<4x256xf32>
    %77 = arith.addf %74, %76 : vector<4x256xf32>
    %78 = arith.mulf %77, %77 : vector<4x256xf32>
    %79 = arith.mulf %77, %78 : vector<4x256xf32>
    %cst_41 = arith.constant 4.471500e-02 : f32
    %80 = vector.broadcast %cst_41 : f32 to vector<4x256xf32>
    %81 = arith.mulf %80, %79 : vector<4x256xf32>
    %82 = arith.addf %77, %81 : vector<4x256xf32>
    %cst_42 = arith.constant 0.797884583 : f32
    %83 = vector.broadcast %cst_42 : f32 to vector<4x256xf32>
    %84 = arith.mulf %83, %82 : vector<4x256xf32>
    %85 = math.tanh %84 : vector<4x256xf32>
    %cst_43 = arith.constant 1.000000e+00 : f32
    %86 = vector.broadcast %cst_43 : f32 to vector<4x256xf32>
    %87 = arith.addf %86, %85 : vector<4x256xf32>
    %cst_44 = arith.constant 5.000000e-01 : f32
    %88 = vector.broadcast %cst_44 : f32 to vector<4x256xf32>
    %89 = arith.mulf %88, %87 : vector<4x256xf32>
    %90 = arith.mulf %77, %89 : vector<4x256xf32>
    %91 = arith.truncf %90 : vector<4x256xf32> to vector<4x256xbf16>
    %c0_45 = arith.constant 0 : index
    %c0_46 = arith.constant 0 : index
    %92 = vector.load %arg13[%c0_45, %c0_46] : memref<256x128xbf16, #tpu.memory_space<vmem>>, vector<256x128xbf16>
    %cst_47 = arith.constant dense<0.000000e+00> : vector<4x128xf32>
    %93 = tpu.matmul %91, %92, %cst_47 {dimension_numbers = #tpu.dot_dimension_numbers<[1], [0], [0], [1], [0, 0, 1, 1], [], []>} : vector<4x256xbf16>, vector<256x128xbf16>, vector<4x128xf32> -> vector<4x128xf32>
    %c0_48 = arith.constant 0 : index
    %c0_49 = arith.constant 0 : index
    %94 = vector.load %arg14[%c0_48, %c0_49] : memref<1x128xf32, #tpu.memory_space<vmem>>, vector<1x128xf32>
    %95 = vector.broadcast %94 : vector<1x128xf32> to vector<4x128xf32>
    %96 = arith.addf %93, %95 : vector<4x128xf32>
    %97 = arith.addf %71, %96 : vector<4x128xf32>
    %c0_50 = arith.constant 0 : index
    %c0_51 = arith.constant 0 : index
    %98 = vector.load %arg15[%c0_50, %c0_51] : memref<1x128xf32, #tpu.memory_space<vmem>>, vector<1x128xf32>
    %c0_52 = arith.constant 0 : index
    %c0_53 = arith.constant 0 : index
    %99 = vector.load %arg16[%c0_52, %c0_53] : memref<1x128xf32, #tpu.memory_space<vmem>>, vector<1x128xf32>
    %cst_54 = arith.constant dense<0.000000e+00> : vector<4xf32>
    %100 = vector.multi_reduction <add>, %97, %cst_54 [1] : vector<4x128xf32> to vector<4xf32>
    %101 = vector.shape_cast %100 : vector<4xf32> to vector<4x1xf32>
    %cst_55 = arith.constant 1.280000e+02 : f32
    %102 = vector.broadcast %cst_55 : f32 to vector<4x1xf32>
    %103 = arith.divf %101, %102 : vector<4x1xf32>
    %104 = vector.broadcast %103 : vector<4x1xf32> to vector<4x128xf32>
    %105 = arith.subf %97, %104 : vector<4x128xf32>
    %106 = arith.mulf %105, %105 : vector<4x128xf32>
    %cst_56 = arith.constant dense<0.000000e+00> : vector<4xf32>
    %107 = vector.multi_reduction <add>, %106, %cst_56 [1] : vector<4x128xf32> to vector<4xf32>
    %108 = vector.shape_cast %107 : vector<4xf32> to vector<4x1xf32>
    %cst_57 = arith.constant 1.280000e+02 : f32
    %109 = vector.broadcast %cst_57 : f32 to vector<4x1xf32>
    %110 = arith.divf %108, %109 : vector<4x1xf32>
    %111 = vector.broadcast %103 : vector<4x1xf32> to vector<4x128xf32>
    %112 = arith.subf %97, %111 : vector<4x128xf32>
    %cst_58 = arith.constant 9.99999974E-6 : f32
    %113 = vector.broadcast %cst_58 : f32 to vector<4x1xf32>
    %114 = arith.addf %110, %113 : vector<4x1xf32>
    %115 = math.rsqrt %114 : vector<4x1xf32>
    %116 = vector.broadcast %115 : vector<4x1xf32> to vector<4x128xf32>
    %117 = arith.mulf %112, %116 : vector<4x128xf32>
    %118 = vector.broadcast %98 : vector<1x128xf32> to vector<4x128xf32>
    %119 = arith.mulf %117, %118 : vector<4x128xf32>
    %120 = vector.broadcast %99 : vector<1x128xf32> to vector<4x128xf32>
    %121 = arith.addf %119, %120 : vector<4x128xf32>
    %c0_59 = arith.constant 0 : index
    %c0_60 = arith.constant 0 : index
    %122 = vector.load %arg17[%c0_59, %c0_60] : memref<1x128xf32, #tpu.memory_space<vmem>>, vector<1x128xf32>
    %123 = vector.broadcast %122 : vector<1x128xf32> to vector<4x128xf32>
    %124 = arith.mulf %121, %123 : vector<4x128xf32>
    %cst_61 = arith.constant dense<0.000000e+00> : vector<4xf32>
    %125 = vector.multi_reduction <add>, %124, %cst_61 [1] : vector<4x128xf32> to vector<4xf32>
    %126 = vector.shape_cast %125 : vector<4xf32> to vector<1x4xf32>
    %c0_62 = arith.constant 0 : index
    %c0_63 = arith.constant 0 : index
    %127 = vector.load %arg18[%c0_62, %c0_63] : memref<1x1xf32, #tpu.memory_space<vmem>>, vector<1x1xf32>
    %128 = vector.broadcast %127 : vector<1x1xf32> to vector<1x4xf32>
    %129 = arith.addf %126, %128 : vector<1x4xf32>
    %cst_64 = arith.constant 0.000000e+00 : f32
    %130 = vector.broadcast %cst_64 : f32 to vector<1x124xf32>
    %131 = tpu.concatenate %129, %130 in 1 : vector<1x4xf32>, vector<1x124xf32> -> vector<1x128xf32>
    %c0_65 = arith.constant 0 : index
    %c0_66 = arith.constant 0 : index
    %132 = vector.load %arg19[%c0_65, %c0_66] : memref<1x128xf32, #tpu.memory_space<vmem>>, vector<1x128xf32>
    tpu.vector_store %arg19[%c0_65, %c0_66], %131 {strides = array<i32>} : memref<1x128xf32, #tpu.memory_space<vmem>>, vector<1x128xf32>,
    return
  }
  func.func @transform_0(%arg0: i32) -> (i32, i32, i32) {
    %c0_i32 = arith.constant 0 : i32
    %c0_i32_0 = arith.constant 0 : i32
    %c0_i32_1 = arith.constant 0 : i32
    return %arg0, %c0_i32, %c0_i32_0 : i32, i32, i32
  }
  func.func @transform_1(%arg0: i32) -> (i32, i32, i32) {
    %c0_i32 = arith.constant 0 : i32
    %c0_i32_0 = arith.constant 0 : i32
    %c0_i32_1 = arith.constant 0 : i32
    return %arg0, %c0_i32, %c0_i32_0 : i32, i32, i32
  }
  func.func @transform_2(%arg0: i32) -> (i32, i32) {
    %c0_i32 = arith.constant 0 : i32
    %c0_i32_0 = arith.constant 0 : i32
    %c0_i32_1 = arith.constant 0 : i32
    return %c0_i32, %c0_i32_0 : i32, i32
  }
  func.func @transform_3(%arg0: i32) -> (i32, i32) {
    %c0_i32 = arith.constant 0 : i32
    %c0_i32_0 = arith.constant 0 : i32
    %c0_i32_1 = arith.constant 0 : i32
    return %c0_i32, %c0_i32_0 : i32, i32
  }
  func.func @transform_4(%arg0: i32) -> (i32, i32) {
    %c0_i32 = arith.constant 0 : i32
    %c0_i32_0 = arith.constant 0 : i32
    %c0_i32_1 = arith.constant 0 : i32
    return %c0_i32, %c0_i32_0 : i32, i32
  }
  func.func @transform_5(%arg0: i32) -> (i32, i32) {
    %c0_i32 = arith.constant 0 : i32
    %c0_i32_0 = arith.constant 0 : i32
    %c0_i32_1 = arith.constant 0 : i32
    return %c0_i32, %c0_i32_0 : i32, i32
  }
  func.func @transform_6(%arg0: i32) -> (i32, i32) {
    %c0_i32 = arith.constant 0 : i32
    %c0_i32_0 = arith.constant 0 : i32
    %c0_i32_1 = arith.constant 0 : i32
    return %c0_i32, %c0_i32_0 : i32, i32
  }
  func.func @transform_7(%arg0: i32) -> (i32, i32) {
    %c0_i32 = arith.constant 0 : i32
    %c0_i32_0 = arith.constant 0 : i32
    %c0_i32_1 = arith.constant 0 : i32
    return %c0_i32, %c0_i32_0 : i32, i32
  }
  func.func @transform_8(%arg0: i32) -> (i32, i32) {
    %c0_i32 = arith.constant 0 : i32
    %c0_i32_0 = arith.constant 0 : i32
    %c0_i32_1 = arith.constant 0 : i32
    return %c0_i32, %c0_i32_0 : i32, i32
  }
  func.func @transform_9(%arg0: i32) -> (i32, i32) {
    %c0_i32 = arith.constant 0 : i32
    %c0_i32_0 = arith.constant 0 : i32
    %c0_i32_1 = arith.constant 0 : i32
    return %c0_i32, %c0_i32_0 : i32, i32
  }
  func.func @transform_10(%arg0: i32) -> (i32, i32) {
    %c0_i32 = arith.constant 0 : i32
    %c0_i32_0 = arith.constant 0 : i32
    %c0_i32_1 = arith.constant 0 : i32
    return %c0_i32, %c0_i32_0 : i32, i32
  }
  func.func @transform_11(%arg0: i32) -> (i32, i32) {
    %c0_i32 = arith.constant 0 : i32
    %c0_i32_0 = arith.constant 0 : i32
    %c0_i32_1 = arith.constant 0 : i32
    return %c0_i32, %c0_i32_0 : i32, i32
  }
  func.func @transform_12(%arg0: i32) -> (i32, i32) {
    %c0_i32 = arith.constant 0 : i32
    %c0_i32_0 = arith.constant 0 : i32
    %c0_i32_1 = arith.constant 0 : i32
    return %c0_i32, %c0_i32_0 : i32, i32
  }
  func.func @transform_13(%arg0: i32) -> (i32, i32) {
    %c0_i32 = arith.constant 0 : i32
    %c0_i32_0 = arith.constant 0 : i32
    %c0_i32_1 = arith.constant 0 : i32
    return %c0_i32, %c0_i32_0 : i32, i32
  }
  func.func @transform_14(%arg0: i32) -> (i32, i32) {
    %c0_i32 = arith.constant 0 : i32
    %c0_i32_0 = arith.constant 0 : i32
    %c0_i32_1 = arith.constant 0 : i32
    return %c0_i32, %c0_i32_0 : i32, i32
  }
  func.func @transform_15(%arg0: i32) -> (i32, i32) {
    %c0_i32 = arith.constant 0 : i32
    %c0_i32_0 = arith.constant 0 : i32
    %c0_i32_1 = arith.constant 0 : i32
    return %c0_i32, %c0_i32_0 : i32, i32
  }
  func.func @transform_16(%arg0: i32) -> (i32, i32) {
    %c0_i32 = arith.constant 0 : i32
    %c0_i32_0 = arith.constant 0 : i32
    %c0_i32_1 = arith.constant 0 : i32
    return %c0_i32, %c0_i32_0 : i32, i32
  }
  func.func @transform_17(%arg0: i32) -> (i32, i32) {
    %c0_i32 = arith.constant 0 : i32
    %c0_i32_0 = arith.constant 0 : i32
    %c0_i32_1 = arith.constant 0 : i32
    return %c0_i32, %c0_i32_0 : i32, i32
  }
  func.func @transform_18(%arg0: i32) -> (i32, i32) {
    %c0_i32 = arith.constant 0 : i32
    %c0_i32_0 = arith.constant 0 : i32
    return %arg0, %c0_i32 : i32, i32
  }
}

</mosaic_0001>

<llo_original>
// kernel: margin_ranking_model_forward.1
$region0: #{margin_ranking_model_forward.1}
  #allocation0 [shape = 'u32[]', space=smem, size = 0x4, offset = 0x4, fixed_abs, tag = 'smem constant byte address 0x4 - core index']
  #allocation1 [shape = 'u32[144,128]{1,0:T(1,128)}', space=vmem, size = 0x12000, scoped, tag = 'internal scratch']
  #allocation2 [shape = 'f32[1,1]{1,0:T(1,128)S(1)}', space=vmem, size = 0x200, scoped, tag = 'scoped memory for margin_ranking_model_forward.1']
  %s0 = inlined_call_operand.vmem [shape: bf16[4,8,128], index: 0, kind: input, shape index: {}]
  %s1 = inlined_call_operand.vmem [shape: f32[4,1,8], index: 1, kind: input, shape index: {}]
  %s2 = inlined_call_operand.vmem [shape: bf16[128,128], index: 2, kind: input, shape index: {}]
  %s3 = inlined_call_operand.vmem [shape: f32[1,128], index: 3, kind: input, shape index: {}]
  %s4 = inlined_call_operand.vmem [shape: bf16[128,256], index: 4, kind: input, shape index: {}]
  %s5 = inlined_call_operand.vmem [shape: f32[1,256], index: 5, kind: input, shape index: {}]
  %s6 = inlined_call_operand.hbm [shape: bf16[128,128], index: 6, kind: input, shape index: {}]
  %s7 = inlined_call_operand.vmem [shape: f32[1,128], index: 7, kind: input, shape index: {}]
  %s8 = inlined_call_operand.vmem [shape: f32[1,128], index: 8, kind: input, shape index: {}]
  %s9 = inlined_call_operand.vmem [shape: f32[1,128], index: 9, kind: input, shape index: {}]
  %s10 = inlined_call_operand.hbm [shape: bf16[128,256], index: 10, kind: input, shape index: {}]
  %s11 = inlined_call_operand.vmem [shape: f32[1,256], index: 11, kind: input, shape index: {}]
  %s12 = inlined_call_operand.hbm [shape: bf16[256,128], index: 12, kind: input, shape index: {}]
  %s13 = inlined_call_operand.vmem [shape: f32[1,128], index: 13, kind: input, shape index: {}]
  %s14 = inlined_call_operand.vmem [shape: f32[1,128], index: 14, kind: input, shape index: {}]
  %s15 = inlined_call_operand.vmem [shape: f32[1,128], index: 15, kind: input, shape index: {}]
  %s16 = inlined_call_operand.vmem [shape: f32[1,128], index: 16, kind: input, shape index: {}]
  %s17 = inlined_call_operand.<no memory space> [shape: f32[1,1], index: 17, kind: input, shape index: {}]
  %s18 = inlined_call_operand.vmem [shape: f32[1,128], index: 18, kind: output, shape index: {}]
  %s19 = sld [smem:[#allocation0]]
  $region94: #{margin_ranking_model_forward.1} parent=0
    _
  %s21 = ssub.s32 1, %s19
  %s22 = scalar_select 0, %s21, %s19
  %v23 = vstv %s17
  %24 = vst [vmem:[#allocation2] sm:$0x1] %v23
  $region1: #{margin_ranking_model_forward.1} parent=0
    #allocation3 [shape = 'u8[32768]{0}', space=vmem, size = 0x8000, scoped, tag = 'input window, operand 6, single buffered']
    #allocation4 [shape = 's32[1]{0}', space=sflag, size = 0x4, scoped, tag = 'scoped memory for margin_ranking_model_forward.1']
    #allocation5 [shape = 'u8[65536]{0}', space=vmem, size = 0x10000, scoped, tag = 'input window, operand 10, single buffered']
    #allocation6 [shape = 's32[1]{0}', space=sflag, size = 0x4, scoped, tag = 'scoped memory for margin_ranking_model_forward.1']
    #allocation7 [shape = 'u8[65536]{0}', space=vmem, size = 0x10000, scoped, tag = 'input window, operand 12, single buffered']
    %25 = vsyncpa [#allocation4], 0
    %26 = vsyncpa [#allocation6], 0
    // Predicated region
    $region2: #{margin_ranking_model_forward.1} parent=1 // pred_check
      _
    $region3: #{margin_ranking_model_forward.1} parent=1 // pred_check_branch
      %28 = sbr.rel (0) target = $region5
    $region4: #{margin_ranking_model_forward.1} parent=1 // pred_region
      _
    $region5: #{margin_ranking_model_forward.1} parent=1 // pred_fallthru
      _
    // Predicated region
    $region6: #{margin_ranking_model_forward.1} parent=1 // pred_check
      _
    $region7: #{margin_ranking_model_forward.1} parent=1 // pred_check_branch
      %30 = sbr.rel (0) target = $region9
    $region8: #{margin_ranking_model_forward.1} parent=1 // pred_region
      _
    $region9: #{margin_ranking_model_forward.1} parent=1 // pred_fallthru
      _
    // Predicated region
    $region10: #{margin_ranking_model_forward.1} parent=1 // pred_check
      _
    $region11: #{margin_ranking_model_forward.1} parent=1 // pred_check_branch
      %32 = sbr.rel (0) target = $region13
    $region12: #{margin_ranking_model_forward.1} parent=1 // pred_region
      _
    $region13: #{margin_ranking_model_forward.1} parent=1 // pred_fallthru
      _
    // Predicated region
    $region14: #{margin_ranking_model_forward.1} parent=1 // pred_check
      _
    $region15: #{margin_ranking_model_forward.1} parent=1 // pred_check_branch
      %34 = sbr.rel (0) target = $region17
    $region16: #{margin_ranking_model_forward.1} parent=1 // pred_region
      _
    $region17: #{margin_ranking_model_forward.1} parent=1 // pred_fallthru
      _
    // Predicated region
    $region18: #{margin_ranking_model_forward.1} parent=1 // pred_check
      _
    $region19: #{margin_ranking_model_forward.1} parent=1 // pred_check_branch
      %36 = sbr.rel (0) target = $region21
    $region20: #{margin_ranking_model_forward.1} parent=1 // pred_region
      _
    $region21: #{margin_ranking_model_forward.1} parent=1 // pred_fallthru
      _
    // Predicated region
    $region22: #{margin_ranking_model_forward.1} parent=1 // pred_check
      _
    $region23: #{margin_ranking_model_forward.1} parent=1 // pred_check_branch
      %38 = sbr.rel (0) target = $region25
    $region24: #{margin_ranking_model_forward.1} parent=1 // pred_region
      _
    $region25: #{margin_ranking_model_forward.1} parent=1 // pred_fallthru
      _
    // Predicated region
    $region26: #{margin_ranking_model_forward.1} parent=1 // pred_check
      _
    $region27: #{margin_ranking_model_forward.1} parent=1 // pred_check_branch
      %40 = sbr.rel (0) target = $region29
    $region28: #{margin_ranking_model_forward.1} parent=1 // pred_region
      %s42 = ssub.s32 1024, 1024
      %43 = vsyncadd [#allocation4], %s42
      %s44 = sshll.u32 [#allocation3], 4
      %s45 = int_to_ptr.vmem [resolvable:$true] %s44
      %50 = dma.hbm_to_vmem [thread:$0]  %s6, 1024, %s45, [#allocation4], 64, 64, 4
    $region29: #{margin_ranking_model_forward.1} parent=1 // pred_fallthru
      _
    // Predicated region
    $region30: #{margin_ranking_model_forward.1} parent=1 // pred_check
      _
    $region31: #{margin_ranking_model_forward.1} parent=1 // pred_check_branch
      %52 = sbr.rel (0) target = $region33
    $region32: #{margin_ranking_model_forward.1} parent=1 // pred_region
      _
    $region33: #{margin_ranking_model_forward.1} parent=1 // pred_fallthru
      _
    // Predicated region
    $region34: #{margin_ranking_model_forward.1} parent=1 // pred_check
      _
    $region35: #{margin_ranking_model_forward.1} parent=1 // pred_check_branch
      %54 = sbr.rel (0) target = $region37
    $region36: #{margin_ranking_model_forward.1} parent=1 // pred_region
      _
    $region37: #{margin_ranking_model_forward.1} parent=1 // pred_fallthru
      _
    // Predicated region
    $region38: #{margin_ranking_model_forward.1} parent=1 // pred_check
      _
    $region39: #{margin_ranking_model_forward.1} parent=1 // pred_check_branch
      %56 = sbr.rel (0) target = $region41
    $region40: #{margin_ranking_model_forward.1} parent=1 // pred_region
      _
    $region41: #{margin_ranking_model_forward.1} parent=1 // pred_fallthru
      _
    // Predicated region
    $region42: #{margin_ranking_model_forward.1} parent=1 // pred_check
      _
    $region43: #{margin_ranking_model_forward.1} parent=1 // pred_check_branch
      %58 = sbr.rel (0) target = $region45
    $region44: #{margin_ranking_model_forward.1} parent=1 // pred_region
      %s60 = ssub.s32 2048, 2048
      %61 = vsyncadd [#allocation6], %s60
      %s62 = sshll.u32 [#allocation5], 4
      %s63 = int_to_ptr.vmem [resolvable:$true] %s62
      %68 = dma.hbm_to_vmem [thread:$0]  %s10, 2048, %s63, [#allocation6], 128, 128, 8
    $region45: #{margin_ranking_model_forward.1} parent=1 // pred_fallthru
      _
    // Predicated region
    $region46: #{margin_ranking_model_forward.1} parent=1 // pred_check
      _
    $region47: #{margin_ranking_model_forward.1} parent=1 // pred_check_branch
      %70 = sbr.rel (0) target = $region49
    $region48: #{margin_ranking_model_forward.1} parent=1 // pred_region
      _
    $region49: #{margin_ranking_model_forward.1} parent=1 // pred_fallthru
      _
    // Predicated region
    $region50: #{margin_ranking_model_forward.1} parent=1 // pred_check
      _
    $region51: #{margin_ranking_model_forward.1} parent=1 // pred_check_branch
      %72 = sbr.rel (0) target = $region53
    $region52: #{margin_ranking_model_forward.1} parent=1 // pred_region
      %s74 = ssub.s32 2048, 2048
      %75 = vsyncadd [#allocation6], %s74
      %s76 = sshll.u32 [#allocation7], 4
      %s77 = int_to_ptr.vmem [resolvable:$true] %s76
      %82 = dma.hbm_to_vmem [thread:$0]  %s12, 2048, %s77, [#allocation6], 64, 64, 4
    $region53: #{margin_ranking_model_forward.1} parent=1 // pred_fallthru
      _
    // Predicated region
    $region54: #{margin_ranking_model_forward.1} parent=1 // pred_check
      _
    $region55: #{margin_ranking_model_forward.1} parent=1 // pred_check_branch
      %84 = sbr.rel (0) target = $region57
    $region56: #{margin_ranking_model_forward.1} parent=1 // pred_region
      _
    $region57: #{margin_ranking_model_forward.1} parent=1 // pred_fallthru
      _
    // Predicated region
    $region58: #{margin_ranking_model_forward.1} parent=1 // pred_check
      _
    $region59: #{margin_ranking_model_forward.1} parent=1 // pred_check_branch
      %86 = sbr.rel (0) target = $region61
    $region60: #{margin_ranking_model_forward.1} parent=1 // pred_region
      _
    $region61: #{margin_ranking_model_forward.1} parent=1 // pred_fallthru
      _
    // Predicated region
    $region62: #{margin_ranking_model_forward.1} parent=1 // pred_check
      _
    $region63: #{margin_ranking_model_forward.1} parent=1 // pred_check_branch
      %88 = sbr.rel (0) target = $region65
    $region64: #{margin_ranking_model_forward.1} parent=1 // pred_region
      _
    $region65: #{margin_ranking_model_forward.1} parent=1 // pred_fallthru
      _
    // Predicated region
    $region66: #{margin_ranking_model_forward.1} parent=1 // pred_check
      _
    $region67: #{margin_ranking_model_forward.1} parent=1 // pred_check_branch
      %90 = sbr.rel (0) target = $region69
    $region68: #{margin_ranking_model_forward.1} parent=1 // pred_region
      _
    $region69: #{margin_ranking_model_forward.1} parent=1 // pred_fallthru
      _
    // Predicated region
    $region70: #{margin_ranking_model_forward.1} parent=1 // pred_check
      _
    $region71: #{margin_ranking_model_forward.1} parent=1 // pred_check_branch
      %92 = sbr.rel (0) target = $region73
    $region72: #{margin_ranking_model_forward.1} parent=1 // pred_region
      _
    $region73: #{margin_ranking_model_forward.1} parent=1 // pred_fallthru
      _
    // Predicated region
    $region74: #{margin_ranking_model_forward.1} parent=1 // pred_check
      _
    $region75: #{margin_ranking_model_forward.1} parent=1 // pred_check_branch
      %94 = sbr.rel (0) target = $region77
    $region76: #{margin_ranking_model_forward.1} parent=1 // pred_region
      %95 = dma.done [#allocation4], 1024
    $region77: #{margin_ranking_model_forward.1} parent=1 // pred_fallthru
      _
    // Predicated region
    $region78: #{margin_ranking_model_forward.1} parent=1 // pred_check
      _
    $region79: #{margin_ranking_model_forward.1} parent=1 // pred_check_branch
      %97 = sbr.rel (0) target = $region81
    $region80: #{margin_ranking_model_forward.1} parent=1 // pred_region
      %98 = dma.done [#allocation6], 2048
    $region81: #{margin_ranking_model_forward.1} parent=1 // pred_fallthru
      _
    // Predicated region
    $region82: #{margin_ranking_model_forward.1} parent=1 // pred_check
      _
    $region83: #{margin_ranking_model_forward.1} parent=1 // pred_check_branch
      %100 = sbr.rel (0) target = $region85
    $region84: #{margin_ranking_model_forward.1} parent=1 // pred_region
      %101 = dma.done [#allocation6], 2048
    $region85: #{margin_ranking_model_forward.1} parent=1 // pred_fallthru
      _
    %v103 = vld [vmem:[%s0] sm:$0xf]
    %v104 = vld [vmem:[%s0 + $0x4] sm:$0xf]
    %v105 = vld [vmem:[%s0 + $0x8] sm:$0xf]
    %v106 = vld [vmem:[%s0 + $0xc] sm:$0xf]
    %v107 = vld [vmem:[%s0] sm:$0x1]
    %v108 = vld [vmem:[%s0 + $0x4] sm:$0x1]
    %v109 = vld [vmem:[%s0 + $0x8] sm:$0x1]
    %v110 = vld [vmem:[%s0 + $0xc] sm:$0x1]
    %v111 = vld [vmem:[%s4] sm:$0xff]
    %v112 = vld [vmem:[%s4 + $0x8] sm:$0xff]
    %v113 = vld [vmem:[%s4 + $0x10] sm:$0xff]
    %v114 = vld [vmem:[%s4 + $0x18] sm:$0xff]
    %v115 = vld [vmem:[%s4 + $0x20] sm:$0xff]
    %v116 = vld [vmem:[%s4 + $0x28] sm:$0xff]
    %v117 = vld [vmem:[%s4 + $0x30] sm:$0xff]
    %v118 = vld [vmem:[%s4 + $0x38] sm:$0xff]
    %v119 = vld [vmem:[%s4 + $0x40] sm:$0xff]
    %v120 = vld [vmem:[%s4 + $0x48] sm:$0xff]
    %v121 = vld [vmem:[%s4 + $0x50] sm:$0xff]
    %v122 = vld [vmem:[%s4 + $0x58] sm:$0xff]
    %v123 = vld [vmem:[%s4 + $0x60] sm:$0xff]
    %v124 = vld [vmem:[%s4 + $0x68] sm:$0xff]
    %v125 = vld [vmem:[%s4 + $0x70] sm:$0xff]
    %v126 = vld [vmem:[%s4 + $0x78] sm:$0xff]
    %v127 = vld [vmem:[%s5] sm:$0x3]
    %v129 = vlaneseq
    %v130 = vshrl.u32 %v129, 7
    %v131 = vsub.s32 0, %v130
    %v132 = vrot.slane %v127, %v131
    %v133 = vlaneseq
    %v134 = vshrl.u32 %v133, 7
    %v135 = vsub.s32 1, %v134
    %v136 = vrot.slane %v127, %v135
    %v143 = vunpack.c.l.b16 %v103
    %v144 = vunpack.c.l.b16 %v104
    %v145 = vunpack.c.l.b16 %v105
    %v146 = vunpack.c.l.b16 %v106
    %v147 = vpack.c.b16 %v144, %v143
    %v148 = vpack.c.b16 %v146, %v145
    %v167 = vunpack.c.l.b16 %v111
    %v168 = vunpack.c.h.b16 %v111
    %v169 = vunpack.c.l.b16 %v112
    %v170 = vunpack.c.h.b16 %v112
    %v171 = vunpack.c.l.b16 %v113
    %v172 = vunpack.c.h.b16 %v113
    %v173 = vunpack.c.l.b16 %v114
    %v174 = vunpack.c.h.b16 %v114
    %v175 = vunpack.c.l.b16 %v115
    %v176 = vunpack.c.h.b16 %v115
    %v177 = vunpack.c.l.b16 %v116
    %v178 = vunpack.c.h.b16 %v116
    %v179 = vunpack.c.l.b16 %v117
    %v180 = vunpack.c.h.b16 %v117
    %v181 = vunpack.c.l.b16 %v118
    %v182 = vunpack.c.h.b16 %v118
    %v183 = vunpack.c.l.b16 %v119
    %v184 = vunpack.c.h.b16 %v119
    %v185 = vunpack.c.l.b16 %v120
    %v186 = vunpack.c.h.b16 %v120
    %v187 = vunpack.c.l.b16 %v121
    %v188 = vunpack.c.h.b16 %v121
    %v189 = vunpack.c.l.b16 %v122
    %v190 = vunpack.c.h.b16 %v122
    %v191 = vunpack.c.l.b16 %v123
    %v192 = vunpack.c.h.b16 %v123
    %v193 = vunpack.c.l.b16 %v124
    %v194 = vunpack.c.h.b16 %v124
    %v195 = vunpack.c.l.b16 %v125
    %v196 = vunpack.c.h.b16 %v125
    %v197 = vunpack.c.l.b16 %v126
    %v198 = vunpack.c.h.b16 %v126
    %v199 = vpack.c.b16 %v169, %v167
    %v200 = vpack.c.b16 %v170, %v168
    %v201 = vpack.c.b16 %v173, %v171
    %v202 = vpack.c.b16 %v174, %v172
    %v203 = vpack.c.b16 %v177, %v175
    %v204 = vpack.c.b16 %v178, %v176
    %v205 = vpack.c.b16 %v181, %v179
    %v206 = vpack.c.b16 %v182, %v180
    %v207 = vpack.c.b16 %v185, %v183
    %v208 = vpack.c.b16 %v186, %v184
    %v209 = vpack.c.b16 %v189, %v187
    %v210 = vpack.c.b16 %v190, %v188
    %v211 = vpack.c.b16 %v193, %v191
    %v212 = vpack.c.b16 %v194, %v192
    %v213 = vpack.c.b16 %v197, %v195
    %v214 = vpack.c.b16 %v198, %v196
    %231 = vmatprep.subr.bf16.mxu0 %v214
    %232 = vmatpush1.bf16.msra.mxu0 %v213
    %233 = vmatprep.subr.bf16.mxu0 %v212
    %234 = vmatpush1.bf16.msra.mxu0 %v211
    %235 = vmatprep.subr.bf16.mxu0 %v210
    %236 = vmatpush1.bf16.msra.mxu0 %v209
    %237 = vmatprep.subr.bf16.mxu0 %v208
    %238 = vmatpush1.bf16.msra.mxu0 %v207
    %239 = vmatprep.subr.bf16.mxu0 %v206
    %240 = vmatpush1.bf16.msra.mxu0 %v205
    %241 = vmatprep.subr.bf16.mxu0 %v204
    %242 = vmatpush1.bf16.msra.mxu0 %v203
    %243 = vmatprep.subr.bf16.mxu0 %v202
    %244 = vmatpush1.bf16.msra.mxu0 %v201
    %245 = vmatprep.subr.bf16.mxu0 %v200
    %246 = vmatpush1.bf16.msra.mxu0 %v199
    %247 = vmatprep.subr.bf16.mxu0 0
    %248 = vmatpush2.bf16.msra.mxu0 0
    %249 = vmatprep.subr.bf16.mxu0 0
    %250 = vmatpush2.bf16.msra.mxu0 0
    %251 = vmatprep.subr.bf16.mxu0 0
    %252 = vmatpush2.bf16.msra.mxu0 0
    %253 = vmatprep.subr.bf16.mxu0 0
    %254 = vmatpush2.bf16.msra.mxu0 0
    %255 = vmatprep.subr.bf16.mxu0 0
    %256 = vmatpush2.bf16.msra.mxu0 0
    %257 = vmatprep.subr.bf16.mxu0 0
    %258 = vmatpush2.bf16.msra.mxu0 0
    %259 = vmatprep.subr.bf16.mxu0 0
    %260 = vmatpush2.bf16.msra.mxu0 0
    %261 = vmatprep.subr.bf16.mxu0 0
    %262 = vmatpush2.bf16.msra.mxu0 0
    %263 = vmatprep.mubr.bf16.mxu0 0
    %264 = vmatmul.mubr.bf16.gmra.mxu0 %v147
    %v265 = vpop.f32.mrf.mxu0
    %v266 = vadd.f32 %v132, %v265
    %v267 = vpop.f32.mrf.mxu0
    %v268 = vadd.f32 %v136, %v267
    %v269 = vpop.f32.mrf.mxu0
    %v270 = vadd.f32 %v132, %v269
    %v271 = vpop.f32.mrf.mxu0
    %v272 = vadd.f32 %v136, %v271
    %273 = vmatprep.mubr.bf16.mxu0 0
    %274 = vmatmul.mubr.bf16.gmra.mxu0 %v148
    %v275 = vpop.f32.mrf.mxu0
    %v276 = vadd.f32 %v132, %v275
    %v277 = vpop.f32.mrf.mxu0
    %v278 = vadd.f32 %v136, %v277
    %v279 = vpop.f32.mrf.mxu0
    %v280 = vadd.f32 %v132, %v279
    %v281 = vpop.f32.mrf.mxu0
    %v282 = vadd.f32 %v136, %v281
    %283 = vdwg.mxu0
    %v284 = vpack.c.bf16 %v270, %v266
    %v285 = vpack.c.bf16 %v280, %v276
    %v288 = vunpack.c.l.b16 %v284
    %v289 = vunpack.c.h.b16 %v284
    %v290 = vunpack.c.l.b16 %v285
    %v291 = vunpack.c.h.b16 %v285
    %v292 = vpack.c.b16 %v288, %v288
    %v293 = vpack.c.b16 %v289, %v289
    %v294 = vpack.c.b16 %v290, %v290
    %v295 = vpack.c.b16 %v291, %v291
    %v300 = vpack.c.bf16 %v272, %v268
    %v301 = vpack.c.bf16 %v282, %v278
    %v304 = vunpack.c.l.b16 %v300
    %v305 = vunpack.c.h.b16 %v300
    %v306 = vunpack.c.l.b16 %v301
    %v307 = vunpack.c.h.b16 %v301
    %v308 = vpack.c.b16 %v304, %v304
    %v309 = vpack.c.b16 %v305, %v305
    %v310 = vpack.c.b16 %v306, %v306
    %v311 = vpack.c.b16 %v307, %v307
    %v312 = vld [vmem:[%s2] sm:$0xf]
    %v313 = vld [vmem:[%s2 + $0x4] sm:$0xf]
    %v314 = vld [vmem:[%s2 + $0x8] sm:$0xf]
    %v315 = vld [vmem:[%s2 + $0xc] sm:$0xf]
    %v316 = vld [vmem:[%s2 + $0x10] sm:$0xf]
    %v317 = vld [vmem:[%s2 + $0x14] sm:$0xf]
    %v318 = vld [vmem:[%s2 + $0x18] sm:$0xf]
    %v319 = vld [vmem:[%s2 + $0x1c] sm:$0xf]
    %v320 = vld [vmem:[%s2 + $0x20] sm:$0xf]
    %v321 = vld [vmem:[%s2 + $0x24] sm:$0xf]
    %v322 = vld [vmem:[%s2 + $0x28] sm:$0xf]
    %v323 = vld [vmem:[%s2 + $0x2c] sm:$0xf]
    %v324 = vld [vmem:[%s2 + $0x30] sm:$0xf]
    %v325 = vld [vmem:[%s2 + $0x34] sm:$0xf]
    %v326 = vld [vmem:[%s2 + $0x38] sm:$0xf]
    %v327 = vld [vmem:[%s2 + $0x3c] sm:$0xf]
    %v328 = vld [vmem:[%s3] sm:$0x1]
    %v330 = vlaneseq
    %v331 = vshrl.u32 %v330, 7
    %v332 = vsub.s32 0, %v331
    %v333 = vrot.slane %v328, %v332
    %v339 = vunpack.c.l.b16 %v107
    %v340 = vunpack.c.l.b16 %v108
    %v341 = vunpack.c.l.b16 %v109
    %v342 = vunpack.c.l.b16 %v110
    %v343 = vpack.c.b16 %v339, %v339
    %v344 = vpack.c.b16 %v340, %v340
    %v345 = vpack.c.b16 %v341, %v341
    %v346 = vpack.c.b16 %v342, %v342
    %v347 = vunpack.c.l.b16 %v343
    %v348 = vunpack.c.l.b16 %v344
    %v349 = vunpack.c.l.b16 %v345
    %v350 = vunpack.c.l.b16 %v346
    %v351 = vrot.slane %v348, 7
    %vm352 = vcmask 1041409
    %v353 = vsel %vm352, %v351, %v347
    %v354 = vrot.slane %v349, 6
    %vm355 = vcmask 1042434
    %v356 = vsel %vm355, %v354, %v353
    %v357 = vrot.slane %v350, 5
    %vm358 = vcmask 1043459
    %v359 = vsel %vm358, %v357, %v356
    %v360 = vpack.c.b16 %v359, %v359
    %v378 = vunpack.c.l.b16 %v312
    %v379 = vunpack.c.l.b16 %v313
    %v380 = vunpack.c.l.b16 %v314
    %v381 = vunpack.c.l.b16 %v315
    %v382 = vunpack.c.l.b16 %v316
    %v383 = vunpack.c.l.b16 %v317
    %v384 = vunpack.c.l.b16 %v318
    %v385 = vunpack.c.l.b16 %v319
    %v386 = vunpack.c.l.b16 %v320
    %v387 = vunpack.c.l.b16 %v321
    %v388 = vunpack.c.l.b16 %v322
    %v389 = vunpack.c.l.b16 %v323
    %v390 = vunpack.c.l.b16 %v324
    %v391 = vunpack.c.l.b16 %v325
    %v392 = vunpack.c.l.b16 %v326
    %v393 = vunpack.c.l.b16 %v327
    %v394 = vpack.c.b16 %v379, %v378
    %v395 = vpack.c.b16 %v381, %v380
    %v396 = vpack.c.b16 %v383, %v382
    %v397 = vpack.c.b16 %v385, %v384
    %v398 = vpack.c.b16 %v387, %v386
    %v399 = vpack.c.b16 %v389, %v388
    %v400 = vpack.c.b16 %v391, %v390
    %v401 = vpack.c.b16 %v393, %v392
    %410 = vmatprep.subr.bf16.mxu0 0
    %411 = vmatpush1.bf16.msra.mxu0 %v401
    %412 = vmatprep.subr.bf16.mxu0 0
    %413 = vmatpush1.bf16.msra.mxu0 %v400
    %414 = vmatprep.subr.bf16.mxu0 0
    %415 = vmatpush1.bf16.msra.mxu0 %v399
    %416 = vmatprep.subr.bf16.mxu0 0
    %417 = vmatpush1.bf16.msra.mxu0 %v398
    %418 = vmatprep.subr.bf16.mxu0 0
    %419 = vmatpush1.bf16.msra.mxu0 %v397
    %420 = vmatprep.subr.bf16.mxu0 0
    %421 = vmatpush1.bf16.msra.mxu0 %v396
    %422 = vmatprep.subr.bf16.mxu0 0
    %423 = vmatpush1.bf16.msra.mxu0 %v395
    %424 = vmatprep.subr.bf16.mxu0 0
    %425 = vmatpush1.bf16.msra.mxu0 %v394
    %426 = vmatprep.subr.bf16.mxu0 0
    %427 = vmatpush2.bf16.msra.mxu0 0
    %428 = vmatprep.subr.bf16.mxu0 0
    %429 = vmatpush2.bf16.msra.mxu0 0
    %430 = vmatprep.subr.bf16.mxu0 0
    %431 = vmatpush2.bf16.msra.mxu0 0
    %432 = vmatprep.subr.bf16.mxu0 0
    %433 = vmatpush2.bf16.msra.mxu0 0
    %434 = vmatprep.subr.bf16.mxu0 0
    %435 = vmatpush2.bf16.msra.mxu0 0
    %436 = vmatprep.subr.bf16.mxu0 0
    %437 = vmatpush2.bf16.msra.mxu0 0
    %438 = vmatprep.subr.bf16.mxu0 0
    %439 = vmatpush2.bf16.msra.mxu0 0
    %440 = vmatprep.subr.bf16.mxu0 0
    %441 = vmatpush2.bf16.msra.mxu0 0
    %442 = vmatprep.mubr.bf16.mxu0 0
    %443 = vmatmul.mubr.bf16.gmra.mxu0 %v360
    %v444 = vpop.f32.mrf.mxu0
    %v445 = vadd.f32 %v333, %v444
    %v446 = vpop.f32.mrf.mxu0
    %v447 = vpop.f32.mrf.mxu0
    %v448 = vpop.f32.mrf.mxu0
    %449 = vdwg.mxu0
    %v450 = vpack.c.bf16 %v445, %v445
    %v453 = vunpack.c.l.s4 1966171168
    %v454 = vunpack.c.0.s8 %v453
    %v455 = vlaneseq
    %v456 = vshrl.u32 %v455, 7
    %v457 = vsub.s32 %v454, %v456
    %v458 = vrot.slane %v450, %v457
    %v459 = vcombine.high %v458, %v458
    %v461 = vunpack.c.l.s4 1966171168
    %v462 = vunpack.c.0.s8 %v461
    %v463 = vlaneseq
    %v464 = vshrl.u32 %v463, 7
    %v465 = vsub.s32 %v462, %v464
    %v466 = vrot.slane %v458, %v465
    %v468 = vunpack.c.l.s4 1966171168
    %v469 = vunpack.c.0.s8 %v468
    %v470 = vlaneseq
    %v471 = vshrl.u32 %v470, 7
    %v472 = vsub.s32 %v469, %v471
    %v473 = vrot.slane %v459, %v472
    %v474 = vunpack.i.l.s16 %v466
    %v475 = vunpack.i.h.s16 %v466
    %v476 = vunpack.i.l.s16 %v473
    %v477 = vunpack.i.h.s16 %v473
    %v478 = vpack.i.b16 %v474, %v474
    %v479 = vlaneseq
    %v480 = vshrl.u32 %v479, 7
    %v481 = vsub.s32 0, %v480
    %v482 = vrot.slane %v478, %v481
    %484 = vmatprep.subr.bf16.mxu0 0
    %485 = vmatpush1.bf16.xpose.msra.mxu0 0
    %486 = vmatprep.subr.bf16.mxu0 0
    %487 = vmatpush1.bf16.xpose.msra.mxu0 0
    %488 = vmatprep.subr.bf16.mxu0 0
    %489 = vmatpush1.bf16.xpose.msra.mxu0 0
    %490 = vmatprep.subr.bf16.mxu0 0
    %491 = vmatpush1.bf16.xpose.msra.mxu0 0
    %492 = vmatprep.subr.bf16.mxu0 0
    %493 = vmatpush1.bf16.xpose.msra.mxu0 0
    %494 = vmatprep.subr.bf16.mxu0 0
    %495 = vmatpush1.bf16.xpose.msra.mxu0 0
    %496 = vmatprep.subr.bf16.mxu0 0
    %497 = vmatpush1.bf16.xpose.msra.mxu0 0
    %498 = vmatprep.subr.bf16.mxu0 0
    %499 = vmatpush1.bf16.xpose.msra.mxu0 %v292
    %500 = vmatprep.subr.bf16.mxu0 0
    %501 = vmatpush2.bf16.xpose.msra.mxu0 0
    %502 = vmatprep.subr.bf16.mxu0 0
    %503 = vmatpush2.bf16.xpose.msra.mxu0 0
    %504 = vmatprep.subr.bf16.mxu0 0
    %505 = vmatpush2.bf16.xpose.msra.mxu0 0
    %506 = vmatprep.subr.bf16.mxu0 0
    %507 = vmatpush2.bf16.xpose.msra.mxu0 0
    %508 = vmatprep.subr.bf16.mxu0 0
    %509 = vmatpush2.bf16.xpose.msra.mxu0 0
    %510 = vmatprep.subr.bf16.mxu0 0
    %511 = vmatpush2.bf16.xpose.msra.mxu0 0
    %512 = vmatprep.subr.bf16.mxu0 0
    %513 = vmatpush2.bf16.xpose.msra.mxu0 0
    %514 = vmatprep.subr.bf16.mxu0 0
    %515 = vmatpush2.bf16.xpose.msra.mxu0 0
    %516 = vmatprep.mubr.bf16.mxu0 0
    %517 = vmatmul.mubr.bf16.gmra.mxu0 %v482
    %v518 = vpop.f32.mrf.mxu0
    %v519 = vadd.f32 0.0, %v518
    %v520 = vpop.f32.mrf.mxu0
    %v521 = vpop.f32.mrf.mxu0
    %v522 = vpop.f32.mrf.mxu0
    %523 = vdwg.mxu0
    %v524 = vpack.i.b16 %v475, %v475
    %v525 = vlaneseq
    %v526 = vshrl.u32 %v525, 7
    %v527 = vsub.s32 0, %v526
    %v528 = vrot.slane %v524, %v527
    %530 = vmatprep.subr.bf16.mxu0 0
    %531 = vmatpush1.bf16.xpose.msra.mxu0 0
    %532 = vmatprep.subr.bf16.mxu0 0
    %533 = vmatpush1.bf16.xpose.msra.mxu0 0
    %534 = vmatprep.subr.bf16.mxu0 0
    %535 = vmatpush1.bf16.xpose.msra.mxu0 0
    %536 = vmatprep.subr.bf16.mxu0 0
    %537 = vmatpush1.bf16.xpose.msra.mxu0 0
    %538 = vmatprep.subr.bf16.mxu0 0
    %539 = vmatpush1.bf16.xpose.msra.mxu0 0
    %540 = vmatprep.subr.bf16.mxu0 0
    %541 = vmatpush1.bf16.xpose.msra.mxu0 0
    %542 = vmatprep.subr.bf16.mxu0 0
    %543 = vmatpush1.bf16.xpose.msra.mxu0 0
    %544 = vmatprep.subr.bf16.mxu0 0
    %545 = vmatpush1.bf16.xpose.msra.mxu0 %v293
    %546 = vmatprep.subr.bf16.mxu0 0
    %547 = vmatpush2.bf16.xpose.msra.mxu0 0
    %548 = vmatprep.subr.bf16.mxu0 0
    %549 = vmatpush2.bf16.xpose.msra.mxu0 0
    %550 = vmatprep.subr.bf16.mxu0 0
    %551 = vmatpush2.bf16.xpose.msra.mxu0 0
    %552 = vmatprep.subr.bf16.mxu0 0
    %553 = vmatpush2.bf16.xpose.msra.mxu0 0
    %554 = vmatprep.subr.bf16.mxu0 0
    %555 = vmatpush2.bf16.xpose.msra.mxu0 0
    %556 = vmatprep.subr.bf16.mxu0 0
    %557 = vmatpush2.bf16.xpose.msra.mxu0 0
    %558 = vmatprep.subr.bf16.mxu0 0
    %559 = vmatpush2.bf16.xpose.msra.mxu0 0
    %560 = vmatprep.subr.bf16.mxu0 0
    %561 = vmatpush2.bf16.xpose.msra.mxu0 0
    %562 = vmatprep.mubr.bf16.mxu0 0
    %563 = vmatmul.mubr.bf16.gmra.mxu0 %v528
    %v564 = vpop.f32.mrf.mxu0
    %v565 = vadd.f32 0.0, %v564
    %v566 = vpop.f32.mrf.mxu0
    %v567 = vpop.f32.mrf.mxu0
    %v568 = vpop.f32.mrf.mxu0
    %569 = vdwg.mxu0
    %v570 = vpack.i.b16 %v476, %v476
    %v571 = vlaneseq
    %v572 = vshrl.u32 %v571, 7
    %v573 = vsub.s32 0, %v572
    %v574 = vrot.slane %v570, %v573
    %576 = vmatprep.subr.bf16.mxu0 0
    %577 = vmatpush1.bf16.xpose.msra.mxu0 0
    %578 = vmatprep.subr.bf16.mxu0 0
    %579 = vmatpush1.bf16.xpose.msra.mxu0 0
    %580 = vmatprep.subr.bf16.mxu0 0
    %581 = vmatpush1.bf16.xpose.msra.mxu0 0
    %582 = vmatprep.subr.bf16.mxu0 0
    %583 = vmatpush1.bf16.xpose.msra.mxu0 0
    %584 = vmatprep.subr.bf16.mxu0 0
    %585 = vmatpush1.bf16.xpose.msra.mxu0 0
    %586 = vmatprep.subr.bf16.mxu0 0
    %587 = vmatpush1.bf16.xpose.msra.mxu0 0
    %588 = vmatprep.subr.bf16.mxu0 0
    %589 = vmatpush1.bf16.xpose.msra.mxu0 0
    %590 = vmatprep.subr.bf16.mxu0 0
    %591 = vmatpush1.bf16.xpose.msra.mxu0 %v294
    %592 = vmatprep.subr.bf16.mxu0 0
    %593 = vmatpush2.bf16.xpose.msra.mxu0 0
    %594 = vmatprep.subr.bf16.mxu0 0
    %595 = vmatpush2.bf16.xpose.msra.mxu0 0
    %596 = vmatprep.subr.bf16.mxu0 0
    %597 = vmatpush2.bf16.xpose.msra.mxu0 0
    %598 = vmatprep.subr.bf16.mxu0 0
    %599 = vmatpush2.bf16.xpose.msra.mxu0 0
    %600 = vmatprep.subr.bf16.mxu0 0
    %601 = vmatpush2.bf16.xpose.msra.mxu0 0
    %602 = vmatprep.subr.bf16.mxu0 0
    %603 = vmatpush2.bf16.xpose.msra.mxu0 0
    %604 = vmatprep.subr.bf16.mxu0 0
    %605 = vmatpush2.bf16.xpose.msra.mxu0 0
    %606 = vmatprep.subr.bf16.mxu0 0
    %607 = vmatpush2.bf16.xpose.msra.mxu0 0
    %608 = vmatprep.mubr.bf16.mxu0 0
    %609 = vmatmul.mubr.bf16.gmra.mxu0 %v574
    %v610 = vpop.f32.mrf.mxu0
    %v611 = vadd.f32 0.0, %v610
    %v612 = vpop.f32.mrf.mxu0
    %v613 = vpop.f32.mrf.mxu0
    %v614 = vpop.f32.mrf.mxu0
    %615 = vdwg.mxu0
    %v616 = vpack.i.b16 %v477, %v477
    %v617 = vlaneseq
    %v618 = vshrl.u32 %v617, 7
    %v619 = vsub.s32 0, %v618
    %v620 = vrot.slane %v616, %v619
    %622 = vmatprep.subr.bf16.mxu0 0
    %623 = vmatpush1.bf16.xpose.msra.mxu0 0
    %624 = vmatprep.subr.bf16.mxu0 0
    %625 = vmatpush1.bf16.xpose.msra.mxu0 0
    %626 = vmatprep.subr.bf16.mxu0 0
    %627 = vmatpush1.bf16.xpose.msra.mxu0 0
    %628 = vmatprep.subr.bf16.mxu0 0
    %629 = vmatpush1.bf16.xpose.msra.mxu0 0
    %630 = vmatprep.subr.bf16.mxu0 0
    %631 = vmatpush1.bf16.xpose.msra.mxu0 0
    %632 = vmatprep.subr.bf16.mxu0 0
    %633 = vmatpush1.bf16.xpose.msra.mxu0 0
    %634 = vmatprep.subr.bf16.mxu0 0
    %635 = vmatpush1.bf16.xpose.msra.mxu0 0
    %636 = vmatprep.subr.bf16.mxu0 0
    %637 = vmatpush1.bf16.xpose.msra.mxu0 %v295
    %638 = vmatprep.subr.bf16.mxu0 0
    %639 = vmatpush2.bf16.xpose.msra.mxu0 0
    %640 = vmatprep.subr.bf16.mxu0 0
    %641 = vmatpush2.bf16.xpose.msra.mxu0 0
    %642 = vmatprep.subr.bf16.mxu0 0
    %643 = vmatpush2.bf16.xpose.msra.mxu0 0
    %644 = vmatprep.subr.bf16.mxu0 0
    %645 = vmatpush2.bf16.xpose.msra.mxu0 0
    %646 = vmatprep.subr.bf16.mxu0 0
    %647 = vmatpush2.bf16.xpose.msra.mxu0 0
    %648 = vmatprep.subr.bf16.mxu0 0
    %649 = vmatpush2.bf16.xpose.msra.mxu0 0
    %650 = vmatprep.subr.bf16.mxu0 0
    %651 = vmatpush2.bf16.xpose.msra.mxu0 0
    %652 = vmatprep.subr.bf16.mxu0 0
    %653 = vmatpush2.bf16.xpose.msra.mxu0 0
    %654 = vmatprep.mubr.bf16.mxu0 0
    %655 = vmatmul.mubr.bf16.gmra.mxu0 %v620
    %v656 = vpop.f32.mrf.mxu0
    %v657 = vadd.f32 0.0, %v656
    %v658 = vpop.f32.mrf.mxu0
    %v659 = vpop.f32.mrf.mxu0
    %v660 = vpop.f32.mrf.mxu0
    %661 = vdwg.mxu0
    %v662 = vmul.f32 %v519, 0.088388346
    %v663 = vmul.f32 %v565, 0.088388346
    %v664 = vmul.f32 %v611, 0.088388346
    %v665 = vmul.f32 %v657, 0.088388346
    %v666 = vld [vmem:[%s1] sm:$0x1]
    %v667 = vld [vmem:[%s1 + $0x1] sm:$0x1]
    %v668 = vld [vmem:[%s1 + $0x2] sm:$0x1]
    %v669 = vld [vmem:[%s1 + $0x3] sm:$0x1]
    %v670 = vadd.f32 %v662, %v666
    %v671 = vadd.f32 %v663, %v667
    %v672 = vadd.f32 %v664, %v668
    %v673 = vadd.f32 %v665, %v669
    %vm674 = vcmask 57344
    %v675 = vsel %vm674, %v670, -inf
    %676 = vmax.xlane.f32.xlu0 %v675
    %v677 = vpop.xlane.xlu0 %676
    %v678 = vsel %vm674, %v671, -inf
    %679 = vmax.xlane.f32.xlu0 %v678
    %v680 = vpop.xlane.xlu0 %679
    %v681 = vsel %vm674, %v672, -inf
    %682 = vmax.xlane.f32.xlu0 %v681
    %v683 = vpop.xlane.xlu0 %682
    %v684 = vsel %vm674, %v673, -inf
    %685 = vmax.xlane.f32.xlu0 %v684
    %v686 = vpop.xlane.xlu0 %685
    %v687 = vsub.f32 %v670, %v677
    %v688 = vsub.f32 %v671, %v680
    %v689 = vsub.f32 %v672, %v683
    %v690 = vsub.f32 %v673, %v686
    %v691 = vmul.f32 %v687, 1.442695
    %v692 = vpow.pop %v691
    %v693 = vmul.f32 %v688, 1.442695
    %v694 = vpow.pop %v693
    %v695 = vmul.f32 %v689, 1.442695
    %v696 = vpow.pop %v695
    %v697 = vmul.f32 %v690, 1.442695
    %v698 = vpow.pop %v697
    %v699 = vsel %vm674, %v692, 0.0
    %700 = vadd.xlane.f32.xlu0 %v699
    %v701 = vpop.xlane.xlu0 %700
    %v702 = vsel %vm674, %v694, 0.0
    %703 = vadd.xlane.f32.xlu0 %v702
    %v704 = vpop.xlane.xlu0 %703
    %v705 = vsel %vm674, %v696, 0.0
    %706 = vadd.xlane.f32.xlu0 %v705
    %v707 = vpop.xlane.xlu0 %706
    %v708 = vsel %vm674, %v698, 0.0
    %709 = vadd.xlane.f32.xlu0 %v708
    %v710 = vpop.xlane.xlu0 %709
    %v711 = vrcp.pop %v701
    %v712 = vrcp.pop %v704
    %v713 = vrcp.pop %v707
    %v714 = vrcp.pop %v710
    %v715 = vmul.f32 %v692, %v711
    %v716 = vmul.f32 %v694, %v712
    %v717 = vmul.f32 %v696, %v713
    %v718 = vmul.f32 %v698, %v714
    %v719 = vpack.c.bf16 %v715, %v715
    %v720 = vpack.c.bf16 %v716, %v716
    %v721 = vpack.c.bf16 %v717, %v717
    %v722 = vpack.c.bf16 %v718, %v718
    %vm723 = vcmask 64512
    %v725 = vsel %vm723, %v719, 0
    %vm727 = vcmask 1043456
    %v729 = vsel %vm727, %v308, 0
    %731 = vmatprep.subr.bf16.mxu0 0
    %732 = vmatpush1.bf16.msra.mxu0 0
    %733 = vmatprep.subr.bf16.mxu0 0
    %734 = vmatpush1.bf16.msra.mxu0 0
    %735 = vmatprep.subr.bf16.mxu0 0
    %736 = vmatpush1.bf16.msra.mxu0 0
    %737 = vmatprep.subr.bf16.mxu0 0
    %738 = vmatpush1.bf16.msra.mxu0 0
    %739 = vmatprep.subr.bf16.mxu0 0
    %740 = vmatpush1.bf16.msra.mxu0 0
    %741 = vmatprep.subr.bf16.mxu0 0
    %742 = vmatpush1.bf16.msra.mxu0 0
    %743 = vmatprep.subr.bf16.mxu0 0
    %744 = vmatpush1.bf16.msra.mxu0 0
    %745 = vmatprep.subr.bf16.mxu0 0
    %746 = vmatpush1.bf16.msra.mxu0 %v729
    %747 = vmatprep.subr.bf16.mxu0 0
    %748 = vmatpush2.bf16.msra.mxu0 0
    %749 = vmatprep.subr.bf16.mxu0 0
    %750 = vmatpush2.bf16.msra.mxu0 0
    %751 = vmatprep.subr.bf16.mxu0 0
    %752 = vmatpush2.bf16.msra.mxu0 0
    %753 = vmatprep.subr.bf16.mxu0 0
    %754 = vmatpush2.bf16.msra.mxu0 0
    %755 = vmatprep.subr.bf16.mxu0 0
    %756 = vmatpush2.bf16.msra.mxu0 0
    %757 = vmatprep.subr.bf16.mxu0 0
    %758 = vmatpush2.bf16.msra.mxu0 0
    %759 = vmatprep.subr.bf16.mxu0 0
    %760 = vmatpush2.bf16.msra.mxu0 0
    %761 = vmatprep.subr.bf16.mxu0 0
    %762 = vmatpush2.bf16.msra.mxu0 0
    %763 = vmatprep.mubr.bf16.mxu0 0
    %764 = vmatmul.mubr.bf16.gmra.mxu0 %v725
    %v765 = vpop.f32.mrf.mxu0
    %v766 = vadd.f32 0.0, %v765
    %v767 = vpop.f32.mrf.mxu0
    %v768 = vpop.f32.mrf.mxu0
    %v769 = vpop.f32.mrf.mxu0
    %770 = vdwg.mxu0
    %v772 = vsel %vm723, %v720, 0
    %v775 = vsel %vm727, %v309, 0
    %777 = vmatprep.subr.bf16.mxu0 0
    %778 = vmatpush1.bf16.msra.mxu0 0
    %779 = vmatprep.subr.bf16.mxu0 0
    %780 = vmatpush1.bf16.msra.mxu0 0
    %781 = vmatprep.subr.bf16.mxu0 0
    %782 = vmatpush1.bf16.msra.mxu0 0
    %783 = vmatprep.subr.bf16.mxu0 0
    %784 = vmatpush1.bf16.msra.mxu0 0
    %785 = vmatprep.subr.bf16.mxu0 0
    %786 = vmatpush1.bf16.msra.mxu0 0
    %787 = vmatprep.subr.bf16.mxu0 0
    %788 = vmatpush1.bf16.msra.mxu0 0
    %789 = vmatprep.subr.bf16.mxu0 0
    %790 = vmatpush1.bf16.msra.mxu0 0
    %791 = vmatprep.subr.bf16.mxu0 0
    %792 = vmatpush1.bf16.msra.mxu0 %v775
    %793 = vmatprep.subr.bf16.mxu0 0
    %794 = vmatpush2.bf16.msra.mxu0 0
    %795 = vmatprep.subr.bf16.mxu0 0
    %796 = vmatpush2.bf16.msra.mxu0 0
    %797 = vmatprep.subr.bf16.mxu0 0
    %798 = vmatpush2.bf16.msra.mxu0 0
    %799 = vmatprep.subr.bf16.mxu0 0
    %800 = vmatpush2.bf16.msra.mxu0 0
    %801 = vmatprep.subr.bf16.mxu0 0
    %802 = vmatpush2.bf16.msra.mxu0 0
    %803 = vmatprep.subr.bf16.mxu0 0
    %804 = vmatpush2.bf16.msra.mxu0 0
    %805 = vmatprep.subr.bf16.mxu0 0
    %806 = vmatpush2.bf16.msra.mxu0 0
    %807 = vmatprep.subr.bf16.mxu0 0
    %808 = vmatpush2.bf16.msra.mxu0 0
    %809 = vmatprep.mubr.bf16.mxu0 0
    %810 = vmatmul.mubr.bf16.gmra.mxu0 %v772
    %v811 = vpop.f32.mrf.mxu0
    %v812 = vadd.f32 0.0, %v811
    %v813 = vpop.f32.mrf.mxu0
    %v814 = vpop.f32.mrf.mxu0
    %v815 = vpop.f32.mrf.mxu0
    %816 = vdwg.mxu0
    %v818 = vsel %vm723, %v721, 0
    %v821 = vsel %vm727, %v310, 0
    %823 = vmatprep.subr.bf16.mxu0 0
    %824 = vmatpush1.bf16.msra.mxu0 0
    %825 = vmatprep.subr.bf16.mxu0 0
    %826 = vmatpush1.bf16.msra.mxu0 0
    %827 = vmatprep.subr.bf16.mxu0 0
    %828 = vmatpush1.bf16.msra.mxu0 0
    %829 = vmatprep.subr.bf16.mxu0 0
    %830 = vmatpush1.bf16.msra.mxu0 0
    %831 = vmatprep.subr.bf16.mxu0 0
    %832 = vmatpush1.bf16.msra.mxu0 0
    %833 = vmatprep.subr.bf16.mxu0 0
    %834 = vmatpush1.bf16.msra.mxu0 0
    %835 = vmatprep.subr.bf16.mxu0 0
    %836 = vmatpush1.bf16.msra.mxu0 0
    %837 = vmatprep.subr.bf16.mxu0 0
    %838 = vmatpush1.bf16.msra.mxu0 %v821
    %839 = vmatprep.subr.bf16.mxu0 0
    %840 = vmatpush2.bf16.msra.mxu0 0
    %841 = vmatprep.subr.bf16.mxu0 0
    %842 = vmatpush2.bf16.msra.mxu0 0
    %843 = vmatprep.subr.bf16.mxu0 0
    %844 = vmatpush2.bf16.msra.mxu0 0
    %845 = vmatprep.subr.bf16.mxu0 0
    %846 = vmatpush2.bf16.msra.mxu0 0
    %847 = vmatprep.subr.bf16.mxu0 0
    %848 = vmatpush2.bf16.msra.mxu0 0
    %849 = vmatprep.subr.bf16.mxu0 0
    %850 = vmatpush2.bf16.msra.mxu0 0
    %851 = vmatprep.subr.bf16.mxu0 0
    %852 = vmatpush2.bf16.msra.mxu0 0
    %853 = vmatprep.subr.bf16.mxu0 0
    %854 = vmatpush2.bf16.msra.mxu0 0
    %855 = vmatprep.mubr.bf16.mxu0 0
    %856 = vmatmul.mubr.bf16.gmra.mxu0 %v818
    %v857 = vpop.f32.mrf.mxu0
    %v858 = vadd.f32 0.0, %v857
    %v859 = vpop.f32.mrf.mxu0
    %v860 = vpop.f32.mrf.mxu0
    %v861 = vpop.f32.mrf.mxu0
    %862 = vdwg.mxu0
    %v864 = vsel %vm723, %v722, 0
    %v867 = vsel %vm727, %v311, 0
    %869 = vmatprep.subr.bf16.mxu0 0
    %870 = vmatpush1.bf16.msra.mxu0 0
    %871 = vmatprep.subr.bf16.mxu0 0
    %872 = vmatpush1.bf16.msra.mxu0 0
    %873 = vmatprep.subr.bf16.mxu0 0
    %874 = vmatpush1.bf16.msra.mxu0 0
    %875 = vmatprep.subr.bf16.mxu0 0
    %876 = vmatpush1.bf16.msra.mxu0 0
    %877 = vmatprep.subr.bf16.mxu0 0
    %878 = vmatpush1.bf16.msra.mxu0 0
    %879 = vmatprep.subr.bf16.mxu0 0
    %880 = vmatpush1.bf16.msra.mxu0 0
    %881 = vmatprep.subr.bf16.mxu0 0
    %882 = vmatpush1.bf16.msra.mxu0 0
    %883 = vmatprep.subr.bf16.mxu0 0
    %884 = vmatpush1.bf16.msra.mxu0 %v867
    %885 = vmatprep.subr.bf16.mxu0 0
    %886 = vmatpush2.bf16.msra.mxu0 0
    %887 = vmatprep.subr.bf16.mxu0 0
    %888 = vmatpush2.bf16.msra.mxu0 0
    %889 = vmatprep.subr.bf16.mxu0 0
    %890 = vmatpush2.bf16.msra.mxu0 0
    %891 = vmatprep.subr.bf16.mxu0 0
    %892 = vmatpush2.bf16.msra.mxu0 0
    %893 = vmatprep.subr.bf16.mxu0 0
    %894 = vmatpush2.bf16.msra.mxu0 0
    %895 = vmatprep.subr.bf16.mxu0 0
    %896 = vmatpush2.bf16.msra.mxu0 0
    %897 = vmatprep.subr.bf16.mxu0 0
    %898 = vmatpush2.bf16.msra.mxu0 0
    %899 = vmatprep.subr.bf16.mxu0 0
    %900 = vmatpush2.bf16.msra.mxu0 0
    %901 = vmatprep.mubr.bf16.mxu0 0
    %902 = vmatmul.mubr.bf16.gmra.mxu0 %v864
    %v903 = vpop.f32.mrf.mxu0
    %v904 = vadd.f32 0.0, %v903
    %v905 = vpop.f32.mrf.mxu0
    %v906 = vpop.f32.mrf.mxu0
    %v907 = vpop.f32.mrf.mxu0
    %908 = vdwg.mxu0
    %v909 = vpack.c.bf16 %v766, %v766
    %v910 = vpack.c.bf16 %v812, %v812
    %v911 = vpack.c.bf16 %v858, %v858
    %v912 = vpack.c.bf16 %v904, %v904
    %v913 = vld [vmem:[#allocation3] sm:$0xf]
    %v914 = vld [vmem:[#allocation3 + $0x4] sm:$0xf]
    %v915 = vld [vmem:[#allocation3 + $0x8] sm:$0xf]
    %v916 = vld [vmem:[#allocation3 + $0xc] sm:$0xf]
    %v917 = vld [vmem:[#allocation3 + $0x10] sm:$0xf]
    %v918 = vld [vmem:[#allocation3 + $0x14] sm:$0xf]
    %v919 = vld [vmem:[#allocation3 + $0x18] sm:$0xf]
    %v920 = vld [vmem:[#allocation3 + $0x1c] sm:$0xf]
    %v921 = vld [vmem:[#allocation3 + $0x20] sm:$0xf]
    %v922 = vld [vmem:[#allocation3 + $0x24] sm:$0xf]
    %v923 = vld [vmem:[#allocation3 + $0x28] sm:$0xf]
    %v924 = vld [vmem:[#allocation3 + $0x2c] sm:$0xf]
    %v925 = vld [vmem:[#allocation3 + $0x30] sm:$0xf]
    %v926 = vld [vmem:[#allocation3 + $0x34] sm:$0xf]
    %v927 = vld [vmem:[#allocation3 + $0x38] sm:$0xf]
    %v928 = vld [vmem:[#allocation3 + $0x3c] sm:$0xf]
    %v929 = vld [vmem:[%s7] sm:$0x1]
    %v931 = vlaneseq
    %v932 = vshrl.u32 %v931, 7
    %v933 = vsub.s32 0, %v932
    %v934 = vrot.slane %v929, %v933
    %v940 = vunpack.c.l.b16 %v909
    %v941 = vunpack.c.l.b16 %v910
    %v942 = vunpack.c.l.b16 %v911
    %v943 = vunpack.c.l.b16 %v912
    %v944 = vrot.slane %v941, 7
    %v945 = vsel %vm352, %v944, %v940
    %v946 = vrot.slane %v942, 6
    %v947 = vsel %vm355, %v946, %v945
    %v948 = vrot.slane %v943, 5
    %v949 = vsel %vm358, %v948, %v947
    %v950 = vpack.c.b16 %v949, %v949
    %v968 = vunpack.c.l.b16 %v913
    %v969 = vunpack.c.l.b16 %v914
    %v970 = vunpack.c.l.b16 %v915
    %v971 = vunpack.c.l.b16 %v916
    %v972 = vunpack.c.l.b16 %v917
    %v973 = vunpack.c.l.b16 %v918
    %v974 = vunpack.c.l.b16 %v919
    %v975 = vunpack.c.l.b16 %v920
    %v976 = vunpack.c.l.b16 %v921
    %v977 = vunpack.c.l.b16 %v922
    %v978 = vunpack.c.l.b16 %v923
    %v979 = vunpack.c.l.b16 %v924
    %v980 = vunpack.c.l.b16 %v925
    %v981 = vunpack.c.l.b16 %v926
    %v982 = vunpack.c.l.b16 %v927
    %v983 = vunpack.c.l.b16 %v928
    %v984 = vpack.c.b16 %v969, %v968
    %v985 = vpack.c.b16 %v971, %v970
    %v986 = vpack.c.b16 %v973, %v972
    %v987 = vpack.c.b16 %v975, %v974
    %v988 = vpack.c.b16 %v977, %v976
    %v989 = vpack.c.b16 %v979, %v978
    %v990 = vpack.c.b16 %v981, %v980
    %v991 = vpack.c.b16 %v983, %v982
    %1000 = vmatprep.subr.bf16.mxu0 0
    %1001 = vmatpush1.bf16.msra.mxu0 %v991
    %1002 = vmatprep.subr.bf16.mxu0 0
    %1003 = vmatpush1.bf16.msra.mxu0 %v990
    %1004 = vmatprep.subr.bf16.mxu0 0
    %1005 = vmatpush1.bf16.msra.mxu0 %v989
    %1006 = vmatprep.subr.bf16.mxu0 0
    %1007 = vmatpush1.bf16.msra.mxu0 %v988
    %1008 = vmatprep.subr.bf16.mxu0 0
    %1009 = vmatpush1.bf16.msra.mxu0 %v987
    %1010 = vmatprep.subr.bf16.mxu0 0
    %1011 = vmatpush1.bf16.msra.mxu0 %v986
    %1012 = vmatprep.subr.bf16.mxu0 0
    %1013 = vmatpush1.bf16.msra.mxu0 %v985
    %1014 = vmatprep.subr.bf16.mxu0 0
    %1015 = vmatpush1.bf16.msra.mxu0 %v984
    %1016 = vmatprep.subr.bf16.mxu0 0
    %1017 = vmatpush2.bf16.msra.mxu0 0
    %1018 = vmatprep.subr.bf16.mxu0 0
    %1019 = vmatpush2.bf16.msra.mxu0 0
    %1020 = vmatprep.subr.bf16.mxu0 0
    %1021 = vmatpush2.bf16.msra.mxu0 0
    %1022 = vmatprep.subr.bf16.mxu0 0
    %1023 = vmatpush2.bf16.msra.mxu0 0
    %1024 = vmatprep.subr.bf16.mxu0 0
    %1025 = vmatpush2.bf16.msra.mxu0 0
    %1026 = vmatprep.subr.bf16.mxu0 0
    %1027 = vmatpush2.bf16.msra.mxu0 0
    %1028 = vmatprep.subr.bf16.mxu0 0
    %1029 = vmatpush2.bf16.msra.mxu0 0
    %1030 = vmatprep.subr.bf16.mxu0 0
    %1031 = vmatpush2.bf16.msra.mxu0 0
    %1032 = vmatprep.mubr.bf16.mxu0 0
    %1033 = vmatmul.mubr.bf16.gmra.mxu0 %v950
    %v1034 = vpop.f32.mrf.mxu0
    %v1035 = vadd.f32 %v934, %v1034
    %v1036 = vpop.f32.mrf.mxu0
    %v1037 = vpop.f32.mrf.mxu0
    %v1038 = vpop.f32.mrf.mxu0
    %1039 = vdwg.mxu0
    %v1040 = vunpack.c.l.bf16 %v107
    %v1041 = vunpack.c.l.bf16 %v108
    %v1042 = vunpack.c.l.bf16 %v109
    %v1043 = vunpack.c.l.bf16 %v110
    %v1045 = vrot.slane %v1035, 1
    %v1046 = vrot.slane %v1035, 2
    %v1047 = vrot.slane %v1035, 3
    %v1052 = vadd.f32 %v1040, %v1035
    %v1053 = vadd.f32 %v1041, %v1045
    %v1054 = vadd.f32 %v1042, %v1046
    %v1055 = vadd.f32 %v1043, %v1047
    %v1056 = vld [vmem:[%s8] sm:$0x1]
    %v1057 = vld [vmem:[%s9] sm:$0x1]
    %v1062 = vrot.slane %v1053, 7
    %v1063 = vsel %vm352, %v1062, %v1052
    %v1064 = vrot.slane %v1054, 6
    %v1065 = vsel %vm355, %v1064, %v1063
    %v1066 = vrot.slane %v1055, 5
    %v1067 = vsel %vm358, %v1066, %v1065
    %v1069 = vsel %vm727, %v1067, 0.0
    %1070 = vadd.xlane.f32.xlu0 %v1069
    %v1071 = vpop.xlane.xlu0 %1070
    %v1072 = vrcp.pop 128.0
    %v1073 = vmul.f32 %v1071, %v1072
    %v1075 = vrot.slane %v1073, 1
    %v1076 = vrot.slane %v1073, 2
    %v1077 = vrot.slane %v1073, 3
    %v1082 = vsub.f32 %v1052, %v1073
    %v1083 = vsub.f32 %v1053, %v1075
    %v1084 = vsub.f32 %v1054, %v1076
    %v1085 = vsub.f32 %v1055, %v1077
    %v1086 = vmul.f32 %v1082, %v1082
    %v1087 = vmul.f32 %v1083, %v1083
    %v1088 = vmul.f32 %v1084, %v1084
    %v1089 = vmul.f32 %v1085, %v1085
    %v1094 = vrot.slane %v1087, 7
    %v1095 = vsel %vm352, %v1094, %v1086
    %v1096 = vrot.slane %v1088, 6
    %v1097 = vsel %vm355, %v1096, %v1095
    %v1098 = vrot.slane %v1089, 5
    %v1099 = vsel %vm358, %v1098, %v1097
    %v1101 = vsel %vm727, %v1099, 0.0
    %1102 = vadd.xlane.f32.xlu0 %v1101
    %v1103 = vpop.xlane.xlu0 %1102
    %v1104 = vmul.f32 %v1103, %v1072
    %v1105 = vadd.f32 %v1104, 1e-05
    %v1106 = vrsqrt.pop %v1105
    %v1108 = vrot.slane %v1106, 1
    %v1109 = vrot.slane %v1106, 2
    %v1110 = vrot.slane %v1106, 3
    %v1115 = vmul.f32 %v1082, %v1106
    %v1116 = vmul.f32 %v1083, %v1108
    %v1117 = vmul.f32 %v1084, %v1109
    %v1118 = vmul.f32 %v1085, %v1110
    %v1120 = vlaneseq
    %v1121 = vshrl.u32 %v1120, 7
    %v1122 = vsub.s32 0, %v1121
    %v1123 = vrot.slane %v1056, %v1122
    %v1125 = vmul.f32 %v1115, %v1123
    %v1126 = vmul.f32 %v1116, %v1123
    %v1127 = vmul.f32 %v1117, %v1123
    %v1128 = vmul.f32 %v1118, %v1123
    %v1130 = vlaneseq
    %v1131 = vshrl.u32 %v1130, 7
    %v1132 = vsub.s32 0, %v1131
    %v1133 = vrot.slane %v1057, %v1132
    %v1135 = vadd.f32 %v1125, %v1133
    %v1136 = vadd.f32 %v1126, %v1133
    %v1137 = vadd.f32 %v1127, %v1133
    %v1138 = vadd.f32 %v1128, %v1133
    %v1139 = vpack.c.bf16 %v1135, %v1135
    %v1140 = vpack.c.bf16 %v1136, %v1136
    %v1141 = vpack.c.bf16 %v1137, %v1137
    %v1142 = vpack.c.bf16 %v1138, %v1138
    %v1143 = vld [vmem:[#allocation5] sm:$0xff]
    %v1144 = vld [vmem:[#allocation5 + $0x8] sm:$0xff]
    %v1145 = vld [vmem:[#allocation5 + $0x10] sm:$0xff]
    %v1146 = vld [vmem:[#allocation5 + $0x18] sm:$0xff]
    %v1147 = vld [vmem:[#allocation5 + $0x20] sm:$0xff]
    %v1148 = vld [vmem:[#allocation5 + $0x28] sm:$0xff]
    %v1149 = vld [vmem:[#allocation5 + $0x30] sm:$0xff]
    %v1150 = vld [vmem:[#allocation5 + $0x38] sm:$0xff]
    %v1151 = vld [vmem:[#allocation5 + $0x40] sm:$0xff]
    %v1152 = vld [vmem:[#allocation5 + $0x48] sm:$0xff]
    %v1153 = vld [vmem:[#allocation5 + $0x50] sm:$0xff]
    %v1154 = vld [vmem:[#allocation5 + $0x58] sm:$0xff]
    %v1155 = vld [vmem:[#allocation5 + $0x60] sm:$0xff]
    %v1156 = vld [vmem:[#allocation5 + $0x68] sm:$0xff]
    %v1157 = vld [vmem:[#allocation5 + $0x70] sm:$0xff]
    %v1158 = vld [vmem:[#allocation5 + $0x78] sm:$0xff]
    %v1159 = vld [vmem:[%s11] sm:$0x3]
    %v1161 = vlaneseq
    %v1162 = vshrl.u32 %v1161, 7
    %v1163 = vsub.s32 0, %v1162
    %v1164 = vrot.slane %v1159, %v1163
    %v1165 = vlaneseq
    %v1166 = vshrl.u32 %v1165, 7
    %v1167 = vsub.s32 1, %v1166
    %v1168 = vrot.slane %v1159, %v1167
    %v1175 = vunpack.c.l.b16 %v1139
    %v1176 = vunpack.c.l.b16 %v1140
    %v1177 = vunpack.c.l.b16 %v1141
    %v1178 = vunpack.c.l.b16 %v1142
    %v1179 = vrot.slane %v1176, 7
    %v1180 = vsel %vm352, %v1179, %v1175
    %v1181 = vrot.slane %v1177, 6
    %v1182 = vsel %vm355, %v1181, %v1180
    %v1183 = vrot.slane %v1178, 5
    %v1184 = vsel %vm358, %v1183, %v1182
    %v1185 = vpack.c.b16 %v1184, %v1184
    %v1203 = vunpack.c.l.b16 %v1143
    %v1204 = vunpack.c.h.b16 %v1143
    %v1205 = vunpack.c.l.b16 %v1144
    %v1206 = vunpack.c.h.b16 %v1144
    %v1207 = vunpack.c.l.b16 %v1145
    %v1208 = vunpack.c.h.b16 %v1145
    %v1209 = vunpack.c.l.b16 %v1146
    %v1210 = vunpack.c.h.b16 %v1146
    %v1211 = vunpack.c.l.b16 %v1147
    %v1212 = vunpack.c.h.b16 %v1147
    %v1213 = vunpack.c.l.b16 %v1148
    %v1214 = vunpack.c.h.b16 %v1148
    %v1215 = vunpack.c.l.b16 %v1149
    %v1216 = vunpack.c.h.b16 %v1149
    %v1217 = vunpack.c.l.b16 %v1150
    %v1218 = vunpack.c.h.b16 %v1150
    %v1219 = vunpack.c.l.b16 %v1151
    %v1220 = vunpack.c.h.b16 %v1151
    %v1221 = vunpack.c.l.b16 %v1152
    %v1222 = vunpack.c.h.b16 %v1152
    %v1223 = vunpack.c.l.b16 %v1153
    %v1224 = vunpack.c.h.b16 %v1153
    %v1225 = vunpack.c.l.b16 %v1154
    %v1226 = vunpack.c.h.b16 %v1154
    %v1227 = vunpack.c.l.b16 %v1155
    %v1228 = vunpack.c.h.b16 %v1155
    %v1229 = vunpack.c.l.b16 %v1156
    %v1230 = vunpack.c.h.b16 %v1156
    %v1231 = vunpack.c.l.b16 %v1157
    %v1232 = vunpack.c.h.b16 %v1157
    %v1233 = vunpack.c.l.b16 %v1158
    %v1234 = vunpack.c.h.b16 %v1158
    %v1235 = vpack.c.b16 %v1205, %v1203
    %v1236 = vpack.c.b16 %v1206, %v1204
    %v1237 = vpack.c.b16 %v1209, %v1207
    %v1238 = vpack.c.b16 %v1210, %v1208
    %v1239 = vpack.c.b16 %v1213, %v1211
    %v1240 = vpack.c.b16 %v1214, %v1212
    %v1241 = vpack.c.b16 %v1217, %v1215
    %v1242 = vpack.c.b16 %v1218, %v1216
    %v1243 = vpack.c.b16 %v1221, %v1219
    %v1244 = vpack.c.b16 %v1222, %v1220
    %v1245 = vpack.c.b16 %v1225, %v1223
    %v1246 = vpack.c.b16 %v1226, %v1224
    %v1247 = vpack.c.b16 %v1229, %v1227
    %v1248 = vpack.c.b16 %v1230, %v1228
    %v1249 = vpack.c.b16 %v1233, %v1231
    %v1250 = vpack.c.b16 %v1234, %v1232
    %1267 = vmatprep.subr.bf16.mxu0 %v1250
    %1268 = vmatpush1.bf16.msra.mxu0 %v1249
    %1269 = vmatprep.subr.bf16.mxu0 %v1248
    %1270 = vmatpush1.bf16.msra.mxu0 %v1247
    %1271 = vmatprep.subr.bf16.mxu0 %v1246
    %1272 = vmatpush1.bf16.msra.mxu0 %v1245
    %1273 = vmatprep.subr.bf16.mxu0 %v1244
    %1274 = vmatpush1.bf16.msra.mxu0 %v1243
    %1275 = vmatprep.subr.bf16.mxu0 %v1242
    %1276 = vmatpush1.bf16.msra.mxu0 %v1241
    %1277 = vmatprep.subr.bf16.mxu0 %v1240
    %1278 = vmatpush1.bf16.msra.mxu0 %v1239
    %1279 = vmatprep.subr.bf16.mxu0 %v1238
    %1280 = vmatpush1.bf16.msra.mxu0 %v1237
    %1281 = vmatprep.subr.bf16.mxu0 %v1236
    %1282 = vmatpush1.bf16.msra.mxu0 %v1235
    %1283 = vmatprep.subr.bf16.mxu0 0
    %1284 = vmatpush2.bf16.msra.mxu0 0
    %1285 = vmatprep.subr.bf16.mxu0 0
    %1286 = vmatpush2.bf16.msra.mxu0 0
    %1287 = vmatprep.subr.bf16.mxu0 0
    %1288 = vmatpush2.bf16.msra.mxu0 0
    %1289 = vmatprep.subr.bf16.mxu0 0
    %1290 = vmatpush2.bf16.msra.mxu0 0
    %1291 = vmatprep.subr.bf16.mxu0 0
    %1292 = vmatpush2.bf16.msra.mxu0 0
    %1293 = vmatprep.subr.bf16.mxu0 0
    %1294 = vmatpush2.bf16.msra.mxu0 0
    %1295 = vmatprep.subr.bf16.mxu0 0
    %1296 = vmatpush2.bf16.msra.mxu0 0
    %1297 = vmatprep.subr.bf16.mxu0 0
    %1298 = vmatpush2.bf16.msra.mxu0 0
    %1299 = vmatprep.mubr.bf16.mxu0 0
    %1300 = vmatmul.mubr.bf16.gmra.mxu0 %v1185
    %v1301 = vpop.f32.mrf.mxu0
    %v1302 = vadd.f32 %v1164, %v1301
    %v1303 = vpop.f32.mrf.mxu0
    %v1304 = vadd.f32 %v1168, %v1303
    %v1305 = vpop.f32.mrf.mxu0
    %v1306 = vpop.f32.mrf.mxu0
    %1307 = vdwg.mxu0
    %v1308 = vmul.f32 %v1302, %v1302
    %v1309 = vmul.f32 %v1304, %v1304
    %v1310 = vmul.f32 %v1302, %v1308
    %v1311 = vmul.f32 %v1304, %v1309
    %v1312 = vmul.f32 %v1310, 0.044715
    %v1313 = vmul.f32 %v1311, 0.044715
    %v1314 = vadd.f32 %v1302, %v1312
    %v1315 = vadd.f32 %v1304, %v1313
    %v1316 = vmul.f32 %v1314, 0.7978846
    %v1317 = vmul.f32 %v1315, 0.7978846
    %v1318 = vtanh.pop %v1316
    %v1319 = vtanh.pop %v1317
    %v1320 = vadd.f32 %v1318, 1.0
    %v1321 = vadd.f32 %v1319, 1.0
    %v1322 = vmul.f32 %v1320, 0.5
    %v1323 = vmul.f32 %v1321, 0.5
    %v1324 = vmul.f32 %v1302, %v1322
    %v1325 = vmul.f32 %v1304, %v1323
    %v1326 = vpack.c.bf16 %v1324, %v1324
    %v1327 = vpack.c.bf16 %v1325, %v1325
    %v1328 = vld [vmem:[#allocation7] sm:$0xf]
    %v1329 = vld [vmem:[#allocation7 + $0x4] sm:$0xf]
    %v1330 = vld [vmem:[#allocation7 + $0x8] sm:$0xf]
    %v1331 = vld [vmem:[#allocation7 + $0xc] sm:$0xf]
    %v1332 = vld [vmem:[#allocation7 + $0x10] sm:$0xf]
    %v1333 = vld [vmem:[#allocation7 + $0x14] sm:$0xf]
    %v1334 = vld [vmem:[#allocation7 + $0x18] sm:$0xf]
    %v1335 = vld [vmem:[#allocation7 + $0x1c] sm:$0xf]
    %v1336 = vld [vmem:[#allocation7 + $0x20] sm:$0xf]
    %v1337 = vld [vmem:[#allocation7 + $0x24] sm:$0xf]
    %v1338 = vld [vmem:[#allocation7 + $0x28] sm:$0xf]
    %v1339 = vld [vmem:[#allocation7 + $0x2c] sm:$0xf]
    %v1340 = vld [vmem:[#allocation7 + $0x30] sm:$0xf]
    %v1341 = vld [vmem:[#allocation7 + $0x34] sm:$0xf]
    %v1342 = vld [vmem:[#allocation7 + $0x38] sm:$0xf]
    %v1343 = vld [vmem:[#allocation7 + $0x3c] sm:$0xf]
    %v1344 = vld [vmem:[#allocation7 + $0x40] sm:$0xf]
    %v1345 = vld [vmem:[#allocation7 + $0x44] sm:$0xf]
    %v1346 = vld [vmem:[#allocation7 + $0x48] sm:$0xf]
    %v1347 = vld [vmem:[#allocation7 + $0x4c] sm:$0xf]
    %v1348 = vld [vmem:[#allocation7 + $0x50] sm:$0xf]
    %v1349 = vld [vmem:[#allocation7 + $0x54] sm:$0xf]
    %v1350 = vld [vmem:[#allocation7 + $0x58] sm:$0xf]
    %v1351 = vld [vmem:[#allocation7 + $0x5c] sm:$0xf]
    %v1352 = vld [vmem:[#allocation7 + $0x60] sm:$0xf]
    %v1353 = vld [vmem:[#allocation7 + $0x64] sm:$0xf]
    %v1354 = vld [vmem:[#allocation7 + $0x68] sm:$0xf]
    %v1355 = vld [vmem:[#allocation7 + $0x6c] sm:$0xf]
    %v1356 = vld [vmem:[#allocation7 + $0x70] sm:$0xf]
    %v1357 = vld [vmem:[#allocation7 + $0x74] sm:$0xf]
    %v1358 = vld [vmem:[#allocation7 + $0x78] sm:$0xf]
    %v1359 = vld [vmem:[#allocation7 + $0x7c] sm:$0xf]
    %v1360 = vld [vmem:[%s13] sm:$0x1]
    %v1362 = vlaneseq
    %v1363 = vshrl.u32 %v1362, 7
    %v1364 = vsub.s32 0, %v1363
    %v1365 = vrot.slane %v1360, %v1364
    %v1399 = vunpack.c.l.b16 %v1328
    %v1400 = vunpack.c.l.b16 %v1329
    %v1401 = vunpack.c.l.b16 %v1330
    %v1402 = vunpack.c.l.b16 %v1331
    %v1403 = vunpack.c.l.b16 %v1332
    %v1404 = vunpack.c.l.b16 %v1333
    %v1405 = vunpack.c.l.b16 %v1334
    %v1406 = vunpack.c.l.b16 %v1335
    %v1407 = vunpack.c.l.b16 %v1336
    %v1408 = vunpack.c.l.b16 %v1337
    %v1409 = vunpack.c.l.b16 %v1338
    %v1410 = vunpack.c.l.b16 %v1339
    %v1411 = vunpack.c.l.b16 %v1340
    %v1412 = vunpack.c.l.b16 %v1341
    %v1413 = vunpack.c.l.b16 %v1342
    %v1414 = vunpack.c.l.b16 %v1343
    %v1415 = vunpack.c.l.b16 %v1344
    %v1416 = vunpack.c.l.b16 %v1345
    %v1417 = vunpack.c.l.b16 %v1346
    %v1418 = vunpack.c.l.b16 %v1347
    %v1419 = vunpack.c.l.b16 %v1348
    %v1420 = vunpack.c.l.b16 %v1349
    %v1421 = vunpack.c.l.b16 %v1350
    %v1422 = vunpack.c.l.b16 %v1351
    %v1423 = vunpack.c.l.b16 %v1352
    %v1424 = vunpack.c.l.b16 %v1353
    %v1425 = vunpack.c.l.b16 %v1354
    %v1426 = vunpack.c.l.b16 %v1355
    %v1427 = vunpack.c.l.b16 %v1356
    %v1428 = vunpack.c.l.b16 %v1357
    %v1429 = vunpack.c.l.b16 %v1358
    %v1430 = vunpack.c.l.b16 %v1359
    %v1431 = vpack.c.b16 %v1400, %v1399
    %v1432 = vpack.c.b16 %v1402, %v1401
    %v1433 = vpack.c.b16 %v1404, %v1403
    %v1434 = vpack.c.b16 %v1406, %v1405
    %v1435 = vpack.c.b16 %v1408, %v1407
    %v1436 = vpack.c.b16 %v1410, %v1409
    %v1437 = vpack.c.b16 %v1412, %v1411
    %v1438 = vpack.c.b16 %v1414, %v1413
    %v1439 = vpack.c.b16 %v1416, %v1415
    %v1440 = vpack.c.b16 %v1418, %v1417
    %v1441 = vpack.c.b16 %v1420, %v1419
    %v1442 = vpack.c.b16 %v1422, %v1421
    %v1443 = vpack.c.b16 %v1424, %v1423
    %v1444 = vpack.c.b16 %v1426, %v1425
    %v1445 = vpack.c.b16 %v1428, %v1427
    %v1446 = vpack.c.b16 %v1430, %v1429
    %1463 = vmatprep.subr.bf16.mxu0 0
    %1464 = vmatpush1.bf16.msra.mxu0 %v1438
    %1465 = vmatprep.subr.bf16.mxu0 0
    %1466 = vmatpush1.bf16.msra.mxu0 %v1437
    %1467 = vmatprep.subr.bf16.mxu0 0
    %1468 = vmatpush1.bf16.msra.mxu0 %v1436
    %1469 = vmatprep.subr.bf16.mxu0 0
    %1470 = vmatpush1.bf16.msra.mxu0 %v1435
    %1471 = vmatprep.subr.bf16.mxu0 0
    %1472 = vmatpush1.bf16.msra.mxu0 %v1434
    %1473 = vmatprep.subr.bf16.mxu0 0
    %1474 = vmatpush1.bf16.msra.mxu0 %v1433
    %1475 = vmatprep.subr.bf16.mxu0 0
    %1476 = vmatpush1.bf16.msra.mxu0 %v1432
    %1477 = vmatprep.subr.bf16.mxu0 0
    %1478 = vmatpush1.bf16.msra.mxu0 %v1431
    %1479 = vmatprep.subr.bf16.mxu0 0
    %1480 = vmatpush2.bf16.msra.mxu0 %v1446
    %1481 = vmatprep.subr.bf16.mxu0 0
    %1482 = vmatpush2.bf16.msra.mxu0 %v1445
    %1483 = vmatprep.subr.bf16.mxu0 0
    %1484 = vmatpush2.bf16.msra.mxu0 %v1444
    %1485 = vmatprep.subr.bf16.mxu0 0
    %1486 = vmatpush2.bf16.msra.mxu0 %v1443
    %1487 = vmatprep.subr.bf16.mxu0 0
    %1488 = vmatpush2.bf16.msra.mxu0 %v1442
    %1489 = vmatprep.subr.bf16.mxu0 0
    %1490 = vmatpush2.bf16.msra.mxu0 %v1441
    %1491 = vmatprep.subr.bf16.mxu0 0
    %1492 = vmatpush2.bf16.msra.mxu0 %v1440
    %1493 = vmatprep.subr.bf16.mxu0 0
    %1494 = vmatpush2.bf16.msra.mxu0 %v1439
    %1495 = vmatprep.mubr.bf16.mxu0 %v1327
    %1496 = vmatmul.mubr.bf16.gmra.mxu0 %v1326
    %v1497 = vpop.f32.mrf.mxu0
    %v1498 = vadd.f32 %v1365, %v1497
    %v1499 = vpop.f32.mrf.mxu0
    %v1500 = vpop.f32.mrf.mxu0
    %v1501 = vpop.f32.mrf.mxu0
    %1502 = vdwg.mxu0
    %v1504 = vrot.slane %v1498, 1
    %v1505 = vrot.slane %v1498, 2
    %v1506 = vrot.slane %v1498, 3
    %v1511 = vadd.f32 %v1135, %v1498
    %v1512 = vadd.f32 %v1136, %v1504
    %v1513 = vadd.f32 %v1137, %v1505
    %v1514 = vadd.f32 %v1138, %v1506
    %v1515 = vld [vmem:[%s14] sm:$0x1]
    %v1516 = vld [vmem:[%s15] sm:$0x1]
    %v1521 = vrot.slane %v1512, 7
    %v1522 = vsel %vm352, %v1521, %v1511
    %v1523 = vrot.slane %v1513, 6
    %v1524 = vsel %vm355, %v1523, %v1522
    %v1525 = vrot.slane %v1514, 5
    %v1526 = vsel %vm358, %v1525, %v1524
    %v1528 = vsel %vm727, %v1526, 0.0
    %1529 = vadd.xlane.f32.xlu0 %v1528
    %v1530 = vpop.xlane.xlu0 %1529
    %v1531 = vmul.f32 %v1530, %v1072
    %v1533 = vrot.slane %v1531, 1
    %v1534 = vrot.slane %v1531, 2
    %v1535 = vrot.slane %v1531, 3
    %v1540 = vsub.f32 %v1511, %v1531
    %v1541 = vsub.f32 %v1512, %v1533
    %v1542 = vsub.f32 %v1513, %v1534
    %v1543 = vsub.f32 %v1514, %v1535
    %v1544 = vmul.f32 %v1540, %v1540
    %v1545 = vmul.f32 %v1541, %v1541
    %v1546 = vmul.f32 %v1542, %v1542
    %v1547 = vmul.f32 %v1543, %v1543
    %v1552 = vrot.slane %v1545, 7
    %v1553 = vsel %vm352, %v1552, %v1544
    %v1554 = vrot.slane %v1546, 6
    %v1555 = vsel %vm355, %v1554, %v1553
    %v1556 = vrot.slane %v1547, 5
    %v1557 = vsel %vm358, %v1556, %v1555
    %v1559 = vsel %vm727, %v1557, 0.0
    %1560 = vadd.xlane.f32.xlu0 %v1559
    %v1561 = vpop.xlane.xlu0 %1560
    %v1562 = vmul.f32 %v1561, %v1072
    %v1563 = vadd.f32 %v1562, 1e-05
    %v1564 = vrsqrt.pop %v1563
    %v1566 = vrot.slane %v1564, 1
    %v1567 = vrot.slane %v1564, 2
    %v1568 = vrot.slane %v1564, 3
    %v1573 = vmul.f32 %v1540, %v1564
    %v1574 = vmul.f32 %v1541, %v1566
    %v1575 = vmul.f32 %v1542, %v1567
    %v1576 = vmul.f32 %v1543, %v1568
    %v1578 = vlaneseq
    %v1579 = vshrl.u32 %v1578, 7
    %v1580 = vsub.s32 0, %v1579
    %v1581 = vrot.slane %v1515, %v1580
    %v1583 = vmul.f32 %v1573, %v1581
    %v1584 = vmul.f32 %v1574, %v1581
    %v1585 = vmul.f32 %v1575, %v1581
    %v1586 = vmul.f32 %v1576, %v1581
    %v1588 = vlaneseq
    %v1589 = vshrl.u32 %v1588, 7
    %v1590 = vsub.s32 0, %v1589
    %v1591 = vrot.slane %v1516, %v1590
    %v1593 = vadd.f32 %v1583, %v1591
    %v1594 = vadd.f32 %v1584, %v1591
    %v1595 = vadd.f32 %v1585, %v1591
    %v1596 = vadd.f32 %v1586, %v1591
    %v1597 = vld [vmem:[%s16] sm:$0x1]
    %v1599 = vlaneseq
    %v1600 = vshrl.u32 %v1599, 7
    %v1601 = vsub.s32 0, %v1600
    %v1602 = vrot.slane %v1597, %v1601
    %v1604 = vmul.f32 %v1593, %v1602
    %v1605 = vmul.f32 %v1594, %v1602
    %v1606 = vmul.f32 %v1595, %v1602
    %v1607 = vmul.f32 %v1596, %v1602
    %v1612 = vrot.slane %v1605, 7
    %v1613 = vsel %vm352, %v1612, %v1604
    %v1614 = vrot.slane %v1606, 6
    %v1615 = vsel %vm355, %v1614, %v1613
    %v1616 = vrot.slane %v1607, 5
    %v1617 = vsel %vm358, %v1616, %v1615
    %v1619 = vsel %vm727, %v1617, 0.0
    %1620 = vadd.xlane.f32.xlu0 %v1619
    %v1621 = vpop.xlane.xlu0 %1620
    %v1622 = vld [vmem:[#allocation2] sm:$0x1]
    %1624 = vset.pattern.permute.xlu0 0
    %1625 = vperm.xlu0 %1624, %v1622
    %v1626 = vpop.permute.xlu0 %1625
    %v1628 = vlaneseq
    %v1629 = vshrl.u32 %v1628, 7
    %v1630 = vsub.s32 0, %v1629
    %v1631 = vrot.slane %v1626, %v1630
    %v1632 = vadd.f32 %v1621, %v1631
    %v1634 = vlaneseq
    %v1635 = vand.u32 %v1634, 127
    %v1636 = vlaneseq
    %v1637 = vshrl.u32 %v1636, 7
    %v1638 = vsub.s32 %v1635, %v1637
    %v1639 = vrot.slane %v1632, %v1638
    %vm1641 = vcmask 31744
    %v1642 = vsel %vm1641, %v1639, 0.0
    %1643 = vst [vmem:[%s18] sm:$0x1] %v1642
    // Predicated region
    $region86: #{margin_ranking_model_forward.1} parent=1 // pred_check
      _
    $region87: #{margin_ranking_model_forward.1} parent=1 // pred_check_branch
      %1645 = sbr.rel (0) target = $region89
    $region88: #{margin_ranking_model_forward.1} parent=1 // pred_region
      _
    $region89: #{margin_ranking_model_forward.1} parent=1 // pred_fallthru
      _
    // Predicated region
    $region90: #{margin_ranking_model_forward.1} parent=1 // pred_check
      _
    $region91: #{margin_ranking_model_forward.1} parent=1 // pred_check_branch
      %1647 = sbr.rel (0) target = $region93
    $region92: #{margin_ranking_model_forward.1} parent=1 // pred_region
      _
    $region93: #{margin_ranking_model_forward.1} parent=1 // pred_fallthru
      _
    %1648 = vsyncpa [#allocation4], 1
    %1649 = vsyncpa [#allocation6], 1

</llo_original>
